<compile_context>
chip_gen: v6e
topology: v6e:2x2x1
jax: 0.10.0
libtpu: 0.0.40
codegen_flags: <defaults>
</compile_context>

<pallas_src>
import math
import functools

import jax
import jax.numpy as jnp
from jax import lax
from jax.experimental import pallas as pl
from jax.experimental.pallas import tpu as pltpu

LN_EPS = 1e-5


def _round_up(x, m):
    return (x + m - 1) // m * m


def _erf(x):
    # Rational-Chebyshev erfc fit (Numerical Recipes "erfcc"), |abs err| < 1.3e-7.
    # Built only from exp/mul/add/div/select, which always lower in Mosaic
    # (avoids depending on a lax.erf lowering rule); exp runs on the EUP slot.
    z = jnp.abs(x)
    t = 1.0 / (1.0 + 0.5 * z)
    poly = -1.26551223 + t * (1.00002368 + t * (0.37409196 + t * (0.09678418 +
            t * (-0.18628806 + t * (0.27886807 + t * (-1.13520398 +
            t * (1.48851587 + t * (-0.82215223 + t * 0.17087277))))))))
    erfc = t * jnp.exp(-z * z + poly)
    return jnp.where(x >= 0, 1.0 - erfc, erfc - 1.0)


def _gelu(x, approximate):
    if approximate:
        # tanh approximation -> EUP slot (nearly free next to the VALU work).
        c = math.sqrt(2.0 / math.pi)
        return 0.5 * x * (1.0 + jnp.tanh(c * (x + 0.044715 * x * x * x)))
    # Exact erf GELU (PyTorch nn.GELU() default).
    return 0.5 * x * (1.0 + _erf(x * (1.0 / math.sqrt(2.0))))


def ffn_kernel(x_ref, w1_ref, b1_ref, w2_ref, b2_ref, gamma_ref, beta_ref,
               o_ref, xn_ref, acc_ref, *, approximate_gelu):
    """Fused pre-LN FFN. Grid = (token tiles, F chunks); F is the reduction axis.

    x_ref:     (TR, D)   token-major input tile (resident across F chunks)
    w1_ref:    (Fc, D)   linear1 weight chunk, PyTorch (out, in) layout
    b1_ref:    (1, Fc)
    w2_ref:    (D, Fc)   linear2 weight chunk, PyTorch (out, in) layout
    b2_ref:    (1, D)
    gamma_ref: (1, D)    LayerNorm scale
    beta_ref:  (1, D)    LayerNorm shift
    o_ref:     (TR, D)   output tile (written at the last F chunk)
    xn_ref:    (TR, D)   scratch: cached LayerNorm output (matmul dtype)
    acc_ref:   (TR, D)   scratch: f32 residual + linear2 accumulator
    """
    j = pl.program_id(1)

    @pl.when(j == 0)
    def _init():
        x = x_ref[...].astype(jnp.float32)
        # One-pass LayerNorm stats over the feature (lane) axis: mean & E[x^2].
        mean = jnp.mean(x, axis=-1, keepdims=True)
        ex2 = jnp.mean(x * x, axis=-1, keepdims=True)
        var = ex2 - mean * mean
        xn = (x - mean) * lax.rsqrt(var + LN_EPS)
        xn = (xn * gamma_ref[...].astype(jnp.float32)
              + beta_ref[...].astype(jnp.float32))
        xn_ref[...] = xn.astype(xn_ref.dtype)   # reused by every F chunk
        acc_ref[...] = x                        # residual seeds the accumulator

    # Linear1 chunk (+ dropout1 == identity): (TR,D) x (Fc,D)^T -> (TR,Fc), f32 acc.
    h = lax.dot_general(xn_ref[...], w1_ref[...],
                        (((1,), (1,)), ((), ())),
                        preferred_element_type=jnp.float32)
    h = h + b1_ref[...].astype(jnp.float32)
    # GELU in f32 (safe on v5e; on v6e/v7x a bf16 tanh GELU would halve the
    # (TR,Fc) intermediate footprint — left as a generation-specific option).
    h = _gelu(h, approximate_gelu)

    # Linear2 chunk (+ dropout2 == identity): (TR,Fc) x (D,Fc)^T -> (TR,D),
    # accumulated in f32 across the F reduction axis.
    acc_ref[...] += lax.dot_general(h.astype(w2_ref.dtype), w2_ref[...],
                                    (((1,), (1,)), ((), ())),
                                    preferred_element_type=jnp.float32)

    @pl.when(j == pl.num_programs(1) - 1)
    def _finalize():
        o_ref[...] = (acc_ref[...]
                      + b2_ref[...].astype(jnp.float32)).astype(o_ref.dtype)


def _pick_f_chunk(D, F, w_bytes, vmem_budget):
    """F chunk: full F if the resident weights fit ~40% of the budget,
    otherwise the largest multiple-of-128 divisor of F whose double-buffered
    w1/w2 chunks fit that budget."""
    w_budget = max(vmem_budget * 2 // 5, 1 << 20)
    if 2 * F * D * w_bytes <= w_budget or F % 128 != 0:
        return F
    fc_cap = w_budget // (4 * D * w_bytes)          # 2 matrices x 2 buffers
    fc_cap = max(128, (fc_cap // 128) * 128)
    fc = (min(fc_cap, F) // 128) * 128
    while fc > 128 and F % fc != 0:
        fc -= 128
    if fc < 128 or F % fc != 0:
        return F                                    # fall back: rely on vmem_limit
    return fc


def _pick_token_tile(N, D, fc, n_f, x_bytes, out_bytes, mm_bytes, w_bytes,
                     block_rows, vmem_budget):
    w_bufs = 1 if n_f == 1 else 2
    weight_bytes = (w_bufs * (2 * fc * D + fc) + 3 * D) * w_bytes
    remaining = max(vmem_budget - weight_bytes, 1 << 20)
    per_tok = (2 * D * x_bytes          # input tile, double buffered
               + 2 * D * out_bytes      # output tile, double buffered
               + D * mm_bytes           # cached LayerNorm output scratch
               + 4 * D                  # f32 accumulator scratch
               + fc * (4 + mm_bytes))   # (TR,Fc) f32 hidden + cast temp
    tr = remaining // per_tok
    tr = min(tr, block_rows, max(128, _round_up(N, 128)))
    if N > 4 * 128:
        # keep >= ~4 token steps so the 'parallel' axis can shard across
        # TensorCores (v7x megacore) and the pipeline has depth.
        tr = min(tr, _round_up(-(-N // 4), 128))
    return max(128, (tr // 128) * 128)


@functools.partial(jax.jit,
                   static_argnames=("block_rows", "block_ff", "approximate_gelu"))
def pre_ln_ffn(src, w1, b1, w2, b2, gamma, beta, *,
               block_rows=1024, block_ff=None, approximate_gelu=False):
    """src: (B, S, d_model) -> (B, S, d_model). Weights in PyTorch (out,in) layout."""
    B, S, D = src.shape
    F = w1.shape[0]
    N = B * S

    x_bytes = src.dtype.itemsize
    w_bytes = w1.dtype.itemsize
    out_bytes = x_bytes
    mm_dtype = w1.dtype                 # matmul operand dtype (bf16 model -> bf16 MXU)
    mm_bytes = jnp.dtype(mm_dtype).itemsize

    # VMEM budget from the actual part; fall back to the smallest (v7x: 64 MiB/TC).
    try:
        vmem_cap = int(pltpu.get_tpu_info().vmem_capacity_bytes)
    except Exception:
        vmem_cap = 64 << 20
    vmem_budget = int(vmem_cap * 0.65)

    if block_ff is not None:
        assert F % block_ff == 0, "block_ff must divide dim_feedforward"
        fc = block_ff
    else:
        fc = _pick_f_chunk(D, F, w_bytes, vmem_budget)
    n_f = F // fc

    tr = _pick_token_tile(N, D, fc, n_f, x_bytes, out_bytes, mm_bytes, w_bytes,
                          block_rows, vmem_budget)
    n_pad = _round_up(N, tr)

    # Token-major slab — no HBM transposes before or after the kernel.
    x2d = src.reshape(N, D)
    if n_pad != N:
        x2d = jnp.pad(x2d, ((0, n_pad - N), (0, 0)))

    # Explicit VMEM limit derived from the chosen tiles (default scoped limit
    # is only 16/32 MiB and would silently under-buffer realistic dims).
    w_bufs = 1 if n_f == 1 else 2
    est = ((w_bufs * (2 * fc * D + fc) + 3 * D) * w_bytes
           + 2 * tr * D * x_bytes + 2 * tr * D * out_bytes
           + tr * D * (mm_bytes + 4)
           + tr * fc * (4 + mm_bytes))
    vmem_limit = int(min(vmem_cap, max(32 << 20, est + est // 2 + (2 << 20))))

    invariant = dict(pipeline_mode=pl.Buffered(1))  # single-buffer resident blocks
    chunked = invariant if n_f == 1 else {}         # F-chunked blocks: default 2 bufs

    kernel = functools.partial(ffn_kernel, approximate_gelu=approximate_gelu)

    out = pl.pallas_call(
        kernel,
        out_shape=jax.ShapeDtypeStruct((n_pad, D), src.dtype),
        grid_spec=pltpu.PrefetchScalarGridSpec(
            num_scalar_prefetch=0,
            grid=(n_pad // tr, n_f),
            in_specs=[
                pl.BlockSpec((tr, D), lambda i, j: (i, 0)),              # x tile
                pl.BlockSpec((fc, D), lambda i, j: (j, 0), **chunked),   # w1 chunk
                pl.BlockSpec((1, fc), lambda i, j: (0, j), **chunked),   # b1 chunk
                pl.BlockSpec((D, fc), lambda i, j: (0, j), **chunked),   # w2 chunk
                pl.BlockSpec((1, D), lambda i, j: (0, 0), **invariant),  # b2
                pl.BlockSpec((1, D), lambda i, j: (0, 0), **invariant),  # gamma
                pl.BlockSpec((1, D), lambda i, j: (0, 0), **invariant),  # beta
            ],
            out_specs=pl.BlockSpec((tr, D), lambda i, j: (i, 0)),
            scratch_shapes=[
                pltpu.VMEM((tr, D), mm_dtype),      # cached LayerNorm output
                pltpu.VMEM((tr, D), jnp.float32),   # residual + linear2 accumulator
            ],
        ),
        compiler_params=pltpu.CompilerParams(
            dimension_semantics=("parallel", "arbitrary"),
            vmem_limit_bytes=vmem_limit,
        ),
    )(x2d, w1, b1.reshape(1, F), w2, b2.reshape(1, D),
      gamma.reshape(1, D), beta.reshape(1, D))

    return out[:N].reshape(B, S, D)


def init_params(key, d_model, d_ff, dtype=jnp.float32):
    """nn.Linear-style init; weights stored in PyTorch (out, in) layout."""
    k1, k2, k3, k4 = jax.random.split(key, 4)
    lim1 = 1.0 / math.sqrt(d_model)
    lim2 = 1.0 / math.sqrt(d_ff)
    w1 = jax.random.uniform(k1, (d_ff, d_model), jnp.float32, -lim1, lim1).astype(dtype)
    b1 = jax.random.uniform(k2, (d_ff,), jnp.float32, -lim1, lim1).astype(dtype)
    w2 = jax.random.uniform(k3, (d_model, d_ff), jnp.float32, -lim2, lim2).astype(dtype)
    b2 = jax.random.uniform(k4, (d_model,), jnp.float32, -lim2, lim2).astype(dtype)
    gamma = jnp.ones((d_model,), dtype)    # nn.LayerNorm defaults
    beta = jnp.zeros((d_model,), dtype)
    return w1, b1, w2, b2, gamma, beta


def reference(src, w1, b1, w2, b2, gamma, beta, *, approximate_gelu=False):
    """Plain-JAX reference (true lax.erf / tanh GELU, high-precision matmuls)."""
    hi = lax.Precision.HIGHEST
    x = src.astype(jnp.float32)
    mean = jnp.mean(x, axis=-1, keepdims=True)
    var = jnp.mean(jnp.square(x - mean), axis=-1, keepdims=True)
    xn = (x - mean) * lax.rsqrt(var + LN_EPS)
    xn = xn * gamma.astype(jnp.float32) + beta.astype(jnp.float32)
    h = jnp.dot(xn, w1.astype(jnp.float32).T, precision=hi) + b1.astype(jnp.float32)
    h = jax.nn.gelu(h, approximate=approximate_gelu)
    y = jnp.dot(h, w2.astype(jnp.float32).T, precision=hi) + b2.astype(jnp.float32)
    return (y + x).astype(src.dtype)


if __name__ == "__main__":
    key = jax.random.PRNGKey(0)
    kp, kx1, kx2 = jax.random.split(key, 3)

    # --- Case 1: module's nominal small shape (batch=2, seq=8, d_model=32, d_ff=64).
    #     Exact-erf GELU (PyTorch nn.GELU() default), single-chunk 1x1 grid.
    D1, F1 = 32, 64
    p1 = init_params(kp, D1, F1)
    src1 = jax.random.normal(kx1, (2, 8, D1), jnp.float32)
    out1 = jax.block_until_ready(pre_ln_ffn(src1, *p1))
    assert out1.shape == src1.shape and out1.dtype == src1.dtype
    ref1 = reference(src1, *p1, approximate_gelu=False)
    assert jnp.allclose(out1, ref1, atol=2e-4, rtol=2e-4), "case 1 mismatch"

    #     tanh-GELU option (EUP fast path) still available.
    out1a = jax.block_until_ready(pre_ln_ffn(src1, *p1, approximate_gelu=True))
    ref1a = reference(src1, *p1, approximate_gelu=True)
    assert jnp.allclose(out1a, ref1a, atol=2e-4, rtol=2e-4), "case 1 tanh mismatch"

    # --- Case 2: multi-step token grid + F-chunk reduction axis + token padding.
    #     N = 640 -> 3 token tiles of 256 (padded to 768); F = 256 -> 2 chunks of 128.
    D2, F2 = 128, 256
    p2 = init_params(kp, D2, F2)
    src2 = jax.random.normal(kx2, (2, 320, D2), jnp.float32)
    out2 = jax.block_until_ready(pre_ln_ffn(src2, *p2, block_rows=256, block_ff=128))
    ref2 = reference(src2, *p2, approximate_gelu=False)
    assert jnp.allclose(out2, ref2, atol=2e-4, rtol=2e-4), "case 2 mismatch"

    # --- Case 3: bf16 activations/weights -> bf16 MXU operands (v6e/v7x path);
    #     LN stats / GELU / accumulation stay f32 inside the kernel.
    p3 = tuple(p.astype(jnp.bfloat16) for p in p2)
    src3 = src2.astype(jnp.bfloat16)
    out3 = jax.block_until_ready(pre_ln_ffn(src3, *p3, block_rows=256, block_ff=128))
    ref3 = reference(src3, *p3, approximate_gelu=False).astype(jnp.float32)
    assert jnp.allclose(out3.astype(jnp.float32), ref3,
                        atol=2e-1, rtol=5e-2), "case 3 mismatch (bf16)"

    print("KERNEL_OK")
</pallas_src>

<mosaic_0001>
module attributes {stable_mosaic.version = 11 : i64} {
  func.func @ffn_kernel(%arg0: i32, %arg1: i32, %arg2: memref<128x32xf32, #tpu.memory_space<vmem>>, %arg3: memref<64x32xf32, #tpu.memory_space<vmem>>, %arg4: memref<1x64xf32, #tpu.memory_space<vmem>>, %arg5: memref<32x64xf32, #tpu.memory_space<vmem>>, %arg6: memref<1x32xf32, #tpu.memory_space<vmem>>, %arg7: memref<1x32xf32, #tpu.memory_space<vmem>>, %arg8: memref<1x32xf32, #tpu.memory_space<vmem>>, %arg9: memref<128x32xf32, #tpu.memory_space<vmem>>, %arg10: memref<128x32xf32, #tpu.memory_space<vmem>>, %arg11: memref<128x32xf32, #tpu.memory_space<vmem>>) attributes {dimension_semantics = [#tpu.dimension_semantics<parallel>, #tpu.dimension_semantics<arbitrary>], iteration_bounds = array<i64: 1, 1>, scalar_prefetch = 0 : i64, scratch_operands = 2 : i64, tpu.core_type = #tpu.core_type<tc>, window_params = [{transform_indices = @transform_0, window_bounds = array<i64: 128, 32>}, {pipeline_mode = #tpu.pipeline_mode<synchronous>, transform_indices = @transform_1, window_bounds = array<i64: 64, 32>}, {pipeline_mode = #tpu.pipeline_mode<synchronous>, transform_indices = @transform_2, window_bounds = array<i64: 1, 64>}, {pipeline_mode = #tpu.pipeline_mode<synchronous>, transform_indices = @transform_3, window_bounds = array<i64: 32, 64>}, {pipeline_mode = #tpu.pipeline_mode<synchronous>, transform_indices = @transform_4, window_bounds = array<i64: 1, 32>}, {pipeline_mode = #tpu.pipeline_mode<synchronous>, transform_indices = @transform_5, window_bounds = array<i64: 1, 32>}, {pipeline_mode = #tpu.pipeline_mode<synchronous>, transform_indices = @transform_6, window_bounds = array<i64: 1, 32>}, {transform_indices = @transform_7, window_bounds = array<i64: 128, 32>}]} {
    %c0_i32 = arith.constant 0 : i32
    %0 = arith.cmpi eq, %arg1, %c0_i32 : i32
    %1 = arith.extui %0 : i1 to i32
    %c0_i32_0 = arith.constant 0 : i32
    %2 = arith.cmpi ne, %1, %c0_i32_0 : i32
    scf.if %2 {
      %c0_35 = arith.constant 0 : index
      %c0_36 = arith.constant 0 : index
      %72 = vector.load %arg2[%c0_35, %c0_36] : memref<128x32xf32, #tpu.memory_space<vmem>>, vector<128x32xf32>
      %cst_37 = arith.constant dense<0.000000e+00> : vector<128xf32>
      %73 = vector.multi_reduction <add>, %72, %cst_37 [1] : vector<128x32xf32> to vector<128xf32>
      %74 = vector.shape_cast %73 : vector<128xf32> to vector<128x1xf32>
      %cst_38 = arith.constant 3.200000e+01 : f32
      %75 = vector.broadcast %cst_38 : f32 to vector<128x1xf32>
      %76 = arith.divf %74, %75 : vector<128x1xf32>
      %77 = arith.mulf %72, %72 : vector<128x32xf32>
      %cst_39 = arith.constant dense<0.000000e+00> : vector<128xf32>
      %78 = vector.multi_reduction <add>, %77, %cst_39 [1] : vector<128x32xf32> to vector<128xf32>
      %79 = vector.shape_cast %78 : vector<128xf32> to vector<128x1xf32>
      %cst_40 = arith.constant 3.200000e+01 : f32
      %80 = vector.broadcast %cst_40 : f32 to vector<128x1xf32>
      %81 = arith.divf %79, %80 : vector<128x1xf32>
      %82 = arith.mulf %76, %76 : vector<128x1xf32>
      %83 = arith.subf %81, %82 : vector<128x1xf32>
      %84 = vector.broadcast %76 : vector<128x1xf32> to vector<128x32xf32>
      %85 = arith.subf %72, %84 : vector<128x32xf32>
      %cst_41 = arith.constant 9.99999974E-6 : f32
      %86 = vector.broadcast %cst_41 : f32 to vector<128x1xf32>
      %87 = arith.addf %83, %86 : vector<128x1xf32>
      %88 = math.rsqrt %87 : vector<128x1xf32>
      %89 = vector.broadcast %88 : vector<128x1xf32> to vector<128x32xf32>
      %90 = arith.mulf %85, %89 : vector<128x32xf32>
      %c0_42 = arith.constant 0 : index
      %c0_43 = arith.constant 0 : index
      %91 = vector.load %arg7[%c0_42, %c0_43] : memref<1x32xf32, #tpu.memory_space<vmem>>, vector<1x32xf32>
      %92 = vector.broadcast %91 : vector<1x32xf32> to vector<128x32xf32>
      %93 = arith.mulf %90, %92 : vector<128x32xf32>
      %c0_44 = arith.constant 0 : index
      %c0_45 = arith.constant 0 : index
      %94 = vector.load %arg8[%c0_44, %c0_45] : memref<1x32xf32, #tpu.memory_space<vmem>>, vector<1x32xf32>
      %95 = vector.broadcast %94 : vector<1x32xf32> to vector<128x32xf32>
      %96 = arith.addf %93, %95 : vector<128x32xf32>
      %c0_46 = arith.constant 0 : index
      %c0_47 = arith.constant 0 : index
      %97 = vector.load %arg10[%c0_46, %c0_47] : memref<128x32xf32, #tpu.memory_space<vmem>>, vector<128x32xf32>
      tpu.vector_store %arg10[%c0_46, %c0_47], %96 {strides = array<i32>} : memref<128x32xf32, #tpu.memory_space<vmem>>, vector<128x32xf32>,
      %c0_48 = arith.constant 0 : index
      %c0_49 = arith.constant 0 : index
      %98 = vector.load %arg11[%c0_48, %c0_49] : memref<128x32xf32, #tpu.memory_space<vmem>>, vector<128x32xf32>
      tpu.vector_store %arg11[%c0_48, %c0_49], %72 {strides = array<i32>} : memref<128x32xf32, #tpu.memory_space<vmem>>, vector<128x32xf32>,
    } else {
    }
    %c0 = arith.constant 0 : index
    %c0_1 = arith.constant 0 : index
    %3 = vector.load %arg10[%c0, %c0_1] : memref<128x32xf32, #tpu.memory_space<vmem>>, vector<128x32xf32>
    %c0_2 = arith.constant 0 : index
    %c0_3 = arith.constant 0 : index
    %4 = vector.load %arg3[%c0_2, %c0_3] : memref<64x32xf32, #tpu.memory_space<vmem>>, vector<64x32xf32>
    %cst = arith.constant dense<0.000000e+00> : vector<128x64xf32>
    %5 = tpu.matmul %3, %4, %cst {dimension_numbers = #tpu.dot_dimension_numbers<[1], [1], [0], [0], [0, 0, 1, 0], [], []>} : vector<128x32xf32>, vector<64x32xf32>, vector<128x64xf32> -> vector<128x64xf32>
    %c0_4 = arith.constant 0 : index
    %c0_5 = arith.constant 0 : index
    %6 = vector.load %arg4[%c0_4, %c0_5] : memref<1x64xf32, #tpu.memory_space<vmem>>, vector<1x64xf32>
    %7 = vector.broadcast %6 : vector<1x64xf32> to vector<128x64xf32>
    %8 = arith.addf %5, %7 : vector<128x64xf32>
    %cst_6 = arith.constant 5.000000e-01 : f32
    %9 = vector.broadcast %cst_6 : f32 to vector<128x64xf32>
    %10 = arith.mulf %9, %8 : vector<128x64xf32>
    %cst_7 = arith.constant 0.707106769 : f32
    %11 = vector.broadcast %cst_7 : f32 to vector<128x64xf32>
    %12 = arith.mulf %8, %11 : vector<128x64xf32>
    %13 = math.absf %12 : vector<128x64xf32>
    %cst_8 = arith.constant 5.000000e-01 : f32
    %14 = vector.broadcast %cst_8 : f32 to vector<128x64xf32>
    %15 = arith.mulf %14, %13 : vector<128x64xf32>
    %cst_9 = arith.constant 1.000000e+00 : f32
    %16 = vector.broadcast %cst_9 : f32 to vector<128x64xf32>
    %17 = arith.addf %16, %15 : vector<128x64xf32>
    %cst_10 = arith.constant 1.000000e+00 : f32
    %18 = vector.broadcast %cst_10 : f32 to vector<128x64xf32>
    %19 = arith.divf %18, %17 : vector<128x64xf32>
    %cst_11 = arith.constant 0.170872763 : f32
    %20 = vector.broadcast %cst_11 : f32 to vector<128x64xf32>
    %21 = arith.mulf %19, %20 : vector<128x64xf32>
    %cst_12 = arith.constant -0.822152256 : f32
    %22 = vector.broadcast %cst_12 : f32 to vector<128x64xf32>
    %23 = arith.addf %22, %21 : vector<128x64xf32>
    %24 = arith.mulf %19, %23 : vector<128x64xf32>
    %cst_13 = arith.constant 1.48851585 : f32
    %25 = vector.broadcast %cst_13 : f32 to vector<128x64xf32>
    %26 = arith.addf %25, %24 : vector<128x64xf32>
    %27 = arith.mulf %19, %26 : vector<128x64xf32>
    %cst_14 = arith.constant -1.13520396 : f32
    %28 = vector.broadcast %cst_14 : f32 to vector<128x64xf32>
    %29 = arith.addf %28, %27 : vector<128x64xf32>
    %30 = arith.mulf %19, %29 : vector<128x64xf32>
    %cst_15 = arith.constant 0.278868079 : f32
    %31 = vector.broadcast %cst_15 : f32 to vector<128x64xf32>
    %32 = arith.addf %31, %30 : vector<128x64xf32>
    %33 = arith.mulf %19, %32 : vector<128x64xf32>
    %cst_16 = arith.constant -0.186288059 : f32
    %34 = vector.broadcast %cst_16 : f32 to vector<128x64xf32>
    %35 = arith.addf %34, %33 : vector<128x64xf32>
    %36 = arith.mulf %19, %35 : vector<128x64xf32>
    %cst_17 = arith.constant 0.0967841818 : f32
    %37 = vector.broadcast %cst_17 : f32 to vector<128x64xf32>
    %38 = arith.addf %37, %36 : vector<128x64xf32>
    %39 = arith.mulf %19, %38 : vector<128x64xf32>
    %cst_18 = arith.constant 0.374091953 : f32
    %40 = vector.broadcast %cst_18 : f32 to vector<128x64xf32>
    %41 = arith.addf %40, %39 : vector<128x64xf32>
    %42 = arith.mulf %19, %41 : vector<128x64xf32>
    %cst_19 = arith.constant 1.00002372 : f32
    %43 = vector.broadcast %cst_19 : f32 to vector<128x64xf32>
    %44 = arith.addf %43, %42 : vector<128x64xf32>
    %45 = arith.mulf %19, %44 : vector<128x64xf32>
    %cst_20 = arith.constant -1.26551223 : f32
    %46 = vector.broadcast %cst_20 : f32 to vector<128x64xf32>
    %47 = arith.addf %46, %45 : vector<128x64xf32>
    %cst_21 = arith.constant 0.000000e+00 : f32
    %48 = vector.broadcast %cst_21 : f32 to vector<128x64xf32>
    %49 = arith.subf %48, %13 : vector<128x64xf32>
    %50 = arith.mulf %49, %13 : vector<128x64xf32>
    %51 = arith.addf %50, %47 : vector<128x64xf32>
    %52 = math.exp %51 : vector<128x64xf32>
    %53 = arith.mulf %19, %52 : vector<128x64xf32>
    %cst_22 = arith.constant 0.000000e+00 : f32
    %54 = vector.broadcast %cst_22 : f32 to vector<128x64xf32>
    %55 = arith.cmpf oge, %12, %54 : vector<128x64xf32>
    %cst_23 = arith.constant 1.000000e+00 : f32
    %56 = vector.broadcast %cst_23 : f32 to vector<128x64xf32>
    %57 = arith.subf %56, %53 : vector<128x64xf32>
    %cst_24 = arith.constant 1.000000e+00 : f32
    %58 = vector.broadcast %cst_24 : f32 to vector<128x64xf32>
    %59 = arith.subf %53, %58 : vector<128x64xf32>
    %60 = arith.select %55, %57, %59 : vector<128x64xi1>, vector<128x64xf32>
    %cst_25 = arith.constant 1.000000e+00 : f32
    %61 = vector.broadcast %cst_25 : f32 to vector<128x64xf32>
    %62 = arith.addf %61, %60 : vector<128x64xf32>
    %63 = arith.mulf %10, %62 : vector<128x64xf32>
    %c0_26 = arith.constant 0 : index
    %c0_27 = arith.constant 0 : index
    %64 = vector.load %arg11[%c0_26, %c0_27] : memref<128x32xf32, #tpu.memory_space<vmem>>, vector<128x32xf32>
    %c0_28 = arith.constant 0 : index
    %c0_29 = arith.constant 0 : index
    %65 = vector.load %arg5[%c0_28, %c0_29] : memref<32x64xf32, #tpu.memory_space<vmem>>, vector<32x64xf32>
    %cst_30 = arith.constant dense<0.000000e+00> : vector<128x32xf32>
    %66 = tpu.matmul %63, %65, %cst_30 {dimension_numbers = #tpu.dot_dimension_numbers<[1], [1], [0], [0], [0, 0, 1, 0], [], []>} : vector<128x64xf32>, vector<32x64xf32>, vector<128x32xf32> -> vector<128x32xf32>
    %67 = arith.addf %64, %66 : vector<128x32xf32>
    %c0_31 = arith.constant 0 : index
    %c0_32 = arith.constant 0 : index
    %68 = vector.load %arg11[%c0_31, %c0_32] : memref<128x32xf32, #tpu.memory_space<vmem>>, vector<128x32xf32>
    tpu.vector_store %arg11[%c0_31, %c0_32], %67 {strides = array<i32>} : memref<128x32xf32, #tpu.memory_space<vmem>>, vector<128x32xf32>,
    %c0_i32_33 = arith.constant 0 : i32
    %69 = arith.cmpi eq, %arg1, %c0_i32_33 : i32
    %70 = arith.extui %69 : i1 to i32
    %c0_i32_34 = arith.constant 0 : i32
    %71 = arith.cmpi ne, %70, %c0_i32_34 : i32
    scf.if %71 {
      %c0_35 = arith.constant 0 : index
      %c0_36 = arith.constant 0 : index
      %72 = vector.load %arg11[%c0_35, %c0_36] : memref<128x32xf32, #tpu.memory_space<vmem>>, vector<128x32xf32>
      %c0_37 = arith.constant 0 : index
      %c0_38 = arith.constant 0 : index
      %73 = vector.load %arg6[%c0_37, %c0_38] : memref<1x32xf32, #tpu.memory_space<vmem>>, vector<1x32xf32>
      %74 = vector.broadcast %73 : vector<1x32xf32> to vector<128x32xf32>
      %75 = arith.addf %72, %74 : vector<128x32xf32>
      %c0_39 = arith.constant 0 : index
      %c0_40 = arith.constant 0 : index
      %76 = vector.load %arg9[%c0_39, %c0_40] : memref<128x32xf32, #tpu.memory_space<vmem>>, vector<128x32xf32>
      tpu.vector_store %arg9[%c0_39, %c0_40], %75 {strides = array<i32>} : memref<128x32xf32, #tpu.memory_space<vmem>>, vector<128x32xf32>,
    } else {
    }
    return
  }
  func.func @transform_0(%arg0: i32, %arg1: i32) -> (i32, i32) {
    %c0_i32 = arith.constant 0 : i32
    %c0_i32_0 = arith.constant 0 : i32
    return %arg0, %c0_i32 : i32, i32
  }
  func.func @transform_1(%arg0: i32, %arg1: i32) -> (i32, i32) {
    %c0_i32 = arith.constant 0 : i32
    %c0_i32_0 = arith.constant 0 : i32
    return %arg1, %c0_i32 : i32, i32
  }
  func.func @transform_2(%arg0: i32, %arg1: i32) -> (i32, i32) {
    %c0_i32 = arith.constant 0 : i32
    %c0_i32_0 = arith.constant 0 : i32
    return %c0_i32, %arg1 : i32, i32
  }
  func.func @transform_3(%arg0: i32, %arg1: i32) -> (i32, i32) {
    %c0_i32 = arith.constant 0 : i32
    %c0_i32_0 = arith.constant 0 : i32
    return %c0_i32, %arg1 : i32, i32
  }
  func.func @transform_4(%arg0: i32, %arg1: i32) -> (i32, i32) {
    %c0_i32 = arith.constant 0 : i32
    %c0_i32_0 = arith.constant 0 : i32
    %c0_i32_1 = arith.constant 0 : i32
    return %c0_i32, %c0_i32_0 : i32, i32
  }
  func.func @transform_5(%arg0: i32, %arg1: i32) -> (i32, i32) {
    %c0_i32 = arith.constant 0 : i32
    %c0_i32_0 = arith.constant 0 : i32
    %c0_i32_1 = arith.constant 0 : i32
    return %c0_i32, %c0_i32_0 : i32, i32
  }
  func.func @transform_6(%arg0: i32, %arg1: i32) -> (i32, i32) {
    %c0_i32 = arith.constant 0 : i32
    %c0_i32_0 = arith.constant 0 : i32
    %c0_i32_1 = arith.constant 0 : i32
    return %c0_i32, %c0_i32_0 : i32, i32
  }
  func.func @transform_7(%arg0: i32, %arg1: i32) -> (i32, i32) {
    %c0_i32 = arith.constant 0 : i32
    %c0_i32_0 = arith.constant 0 : i32
    return %arg0, %c0_i32 : i32, i32
  }
}

</mosaic_0001>

<llo_original>
// kernel: pre_ln_ffn.1
$region0: #{pre_ln_ffn.1}
  #allocation0 [shape = 'u32[]', space=smem, size = 0x4, offset = 0x4, fixed_abs, tag = 'smem constant byte address 0x4 - core index']
  #allocation1 [shape = 'u32[144,128]{1,0:T(1,128)}', space=vmem, size = 0x12000, scoped, tag = 'internal scratch']
  #allocation2 [shape = 'f32[128,32]{1,0:T(8,128)}', space=vmem, size = 0x10000, scoped, tag = 'scratch operand']
  #allocation3 [shape = 'f32[128,32]{1,0:T(8,128)}', space=vmem, size = 0x10000, scoped, tag = 'scratch operand']
  %s0 = inlined_call_operand.vmem [shape: f32[128,32], index: 0, kind: input, shape index: {}]
  %s1 = inlined_call_operand.vmem [shape: f32[64,32], index: 1, kind: input, shape index: {}]
  %s2 = inlined_call_operand.vmem [shape: f32[1,64], index: 2, kind: input, shape index: {}]
  %s3 = inlined_call_operand.vmem [shape: f32[32,64], index: 3, kind: input, shape index: {}]
  %s4 = inlined_call_operand.vmem [shape: f32[1,32], index: 4, kind: input, shape index: {}]
  %s5 = inlined_call_operand.vmem [shape: f32[1,32], index: 5, kind: input, shape index: {}]
  %s6 = inlined_call_operand.vmem [shape: f32[1,32], index: 6, kind: input, shape index: {}]
  %s7 = inlined_call_operand.vmem [shape: f32[128,32], index: 7, kind: output, shape index: {}]
  %s8 = sld [smem:[#allocation0]]
  $region46: #{pre_ln_ffn.1} parent=0
    _
  %s10 = ssub.s32 1, %s8
  %s11 = scalar_select 0, %s10, %s8
  // Predicated region
  $region2: #{pre_ln_ffn.1} parent=0 // pred_check
    _
  $region3: #{pre_ln_ffn.1} parent=0 // pred_check_branch
    %13 = sbr.rel (0) target = $region5
  $region4: #{pre_ln_ffn.1} parent=0 // pred_region
    _
  $region5: #{pre_ln_ffn.1} parent=0 // pred_fallthru
    _
  // Predicated region
  $region6: #{pre_ln_ffn.1} parent=0 // pred_check
    _
  $region7: #{pre_ln_ffn.1} parent=0 // pred_check_branch
    %15 = sbr.rel (0) target = $region9
  $region8: #{pre_ln_ffn.1} parent=0 // pred_region
    _
  $region9: #{pre_ln_ffn.1} parent=0 // pred_fallthru
    _
  // Predicated region
  $region10: #{pre_ln_ffn.1} parent=0 // pred_check
    _
  $region11: #{pre_ln_ffn.1} parent=0 // pred_check_branch
    %17 = sbr.rel (0) target = $region13
  $region12: #{pre_ln_ffn.1} parent=0 // pred_region
    _
  $region13: #{pre_ln_ffn.1} parent=0 // pred_fallthru
    _
  // Predicated region
  $region14: #{pre_ln_ffn.1} parent=0 // pred_check
    _
  $region15: #{pre_ln_ffn.1} parent=0 // pred_check_branch
    %19 = sbr.rel (0) target = $region17
  $region16: #{pre_ln_ffn.1} parent=0 // pred_region
    _
  $region17: #{pre_ln_ffn.1} parent=0 // pred_fallthru
    _
  // Predicated region
  $region18: #{pre_ln_ffn.1} parent=0 // pred_check
    _
  $region19: #{pre_ln_ffn.1} parent=0 // pred_check_branch
    %21 = sbr.rel (0) target = $region21
  $region20: #{pre_ln_ffn.1} parent=0 // pred_region
    _
  $region21: #{pre_ln_ffn.1} parent=0 // pred_fallthru
    _
  // Predicated region
  $region22: #{pre_ln_ffn.1} parent=0 // pred_check
    _
  $region23: #{pre_ln_ffn.1} parent=0 // pred_check_branch
    %23 = sbr.rel (0) target = $region25
  $region24: #{pre_ln_ffn.1} parent=0 // pred_region
    _
  $region25: #{pre_ln_ffn.1} parent=0 // pred_fallthru
    _
  // Predicated region
  $region26: #{pre_ln_ffn.1} parent=0 // pred_check
    _
  $region27: #{pre_ln_ffn.1} parent=0 // pred_check_branch
    %25 = sbr.rel (0) target = $region29
  $region28: #{pre_ln_ffn.1} parent=0 // pred_region
    _
  $region29: #{pre_ln_ffn.1} parent=0 // pred_fallthru
    _
  %p26 = scmp.eq.s32.totalorder 0, 0
  // Predicated region
  $region30: #{pre_ln_ffn.1} parent=0 // pred_check
    %p27 = pneg %p26
  $region31: #{pre_ln_ffn.1} parent=0 // pred_check_branch
    %29 = sbr.rel (%p27) target = $region33
  $region32: #{pre_ln_ffn.1} parent=0 // pred_region
    %v30 = vld [vmem:[%s0] sm:$0xff]
    %v31 = vld [vmem:[%s0 + $0x8] sm:$0xff]
    %v32 = vld [vmem:[%s0 + $0x10] sm:$0xff]
    %v33 = vld [vmem:[%s0 + $0x18] sm:$0xff]
    %v34 = vld [vmem:[%s0 + $0x20] sm:$0xff]
    %v35 = vld [vmem:[%s0 + $0x28] sm:$0xff]
    %v36 = vld [vmem:[%s0 + $0x30] sm:$0xff]
    %v37 = vld [vmem:[%s0 + $0x38] sm:$0xff]
    %v38 = vld [vmem:[%s0 + $0x40] sm:$0xff]
    %v39 = vld [vmem:[%s0 + $0x48] sm:$0xff]
    %v40 = vld [vmem:[%s0 + $0x50] sm:$0xff]
    %v41 = vld [vmem:[%s0 + $0x58] sm:$0xff]
    %v42 = vld [vmem:[%s0 + $0x60] sm:$0xff]
    %v43 = vld [vmem:[%s0 + $0x68] sm:$0xff]
    %v44 = vld [vmem:[%s0 + $0x70] sm:$0xff]
    %v45 = vld [vmem:[%s0 + $0x78] sm:$0xff]
    %vm46 = vcmask 261120
    %v47 = vsel %vm46, %v30, 0.0
    %48 = vadd.xlane.f32.xlu0 %v47
    %v49 = vpop.xlane.xlu0 %48
    %v50 = vsel %vm46, %v31, 0.0
    %51 = vadd.xlane.f32.xlu0 %v50
    %v52 = vpop.xlane.xlu0 %51
    %v53 = vsel %vm46, %v32, 0.0
    %54 = vadd.xlane.f32.xlu0 %v53
    %v55 = vpop.xlane.xlu0 %54
    %v56 = vsel %vm46, %v33, 0.0
    %57 = vadd.xlane.f32.xlu0 %v56
    %v58 = vpop.xlane.xlu0 %57
    %v59 = vsel %vm46, %v34, 0.0
    %60 = vadd.xlane.f32.xlu0 %v59
    %v61 = vpop.xlane.xlu0 %60
    %v62 = vsel %vm46, %v35, 0.0
    %63 = vadd.xlane.f32.xlu0 %v62
    %v64 = vpop.xlane.xlu0 %63
    %v65 = vsel %vm46, %v36, 0.0
    %66 = vadd.xlane.f32.xlu0 %v65
    %v67 = vpop.xlane.xlu0 %66
    %v68 = vsel %vm46, %v37, 0.0
    %69 = vadd.xlane.f32.xlu0 %v68
    %v70 = vpop.xlane.xlu0 %69
    %v71 = vsel %vm46, %v38, 0.0
    %72 = vadd.xlane.f32.xlu0 %v71
    %v73 = vpop.xlane.xlu0 %72
    %v74 = vsel %vm46, %v39, 0.0
    %75 = vadd.xlane.f32.xlu0 %v74
    %v76 = vpop.xlane.xlu0 %75
    %v77 = vsel %vm46, %v40, 0.0
    %78 = vadd.xlane.f32.xlu0 %v77
    %v79 = vpop.xlane.xlu0 %78
    %v80 = vsel %vm46, %v41, 0.0
    %81 = vadd.xlane.f32.xlu0 %v80
    %v82 = vpop.xlane.xlu0 %81
    %v83 = vsel %vm46, %v42, 0.0
    %84 = vadd.xlane.f32.xlu0 %v83
    %v85 = vpop.xlane.xlu0 %84
    %v86 = vsel %vm46, %v43, 0.0
    %87 = vadd.xlane.f32.xlu0 %v86
    %v88 = vpop.xlane.xlu0 %87
    %v89 = vsel %vm46, %v44, 0.0
    %90 = vadd.xlane.f32.xlu0 %v89
    %v91 = vpop.xlane.xlu0 %90
    %v92 = vsel %vm46, %v45, 0.0
    %93 = vadd.xlane.f32.xlu0 %v92
    %v94 = vpop.xlane.xlu0 %93
    %v95 = vrcp.pop 32.0
    %v96 = vmul.f32 %v49, %v95
    %v97 = vmul.f32 %v52, %v95
    %v98 = vmul.f32 %v55, %v95
    %v99 = vmul.f32 %v58, %v95
    %v100 = vmul.f32 %v61, %v95
    %v101 = vmul.f32 %v64, %v95
    %v102 = vmul.f32 %v67, %v95
    %v103 = vmul.f32 %v70, %v95
    %v104 = vmul.f32 %v73, %v95
    %v105 = vmul.f32 %v76, %v95
    %v106 = vmul.f32 %v79, %v95
    %v107 = vmul.f32 %v82, %v95
    %v108 = vmul.f32 %v85, %v95
    %v109 = vmul.f32 %v88, %v95
    %v110 = vmul.f32 %v91, %v95
    %v111 = vmul.f32 %v94, %v95
    %v112 = vmul.f32 %v30, %v30
    %v113 = vmul.f32 %v31, %v31
    %v114 = vmul.f32 %v32, %v32
    %v115 = vmul.f32 %v33, %v33
    %v116 = vmul.f32 %v34, %v34
    %v117 = vmul.f32 %v35, %v35
    %v118 = vmul.f32 %v36, %v36
    %v119 = vmul.f32 %v37, %v37
    %v120 = vmul.f32 %v38, %v38
    %v121 = vmul.f32 %v39, %v39
    %v122 = vmul.f32 %v40, %v40
    %v123 = vmul.f32 %v41, %v41
    %v124 = vmul.f32 %v42, %v42
    %v125 = vmul.f32 %v43, %v43
    %v126 = vmul.f32 %v44, %v44
    %v127 = vmul.f32 %v45, %v45
    %v128 = vsel %vm46, %v112, 0.0
    %129 = vadd.xlane.f32.xlu0 %v128
    %v130 = vpop.xlane.xlu0 %129
    %v131 = vsel %vm46, %v113, 0.0
    %132 = vadd.xlane.f32.xlu0 %v131
    %v133 = vpop.xlane.xlu0 %132
    %v134 = vsel %vm46, %v114, 0.0
    %135 = vadd.xlane.f32.xlu0 %v134
    %v136 = vpop.xlane.xlu0 %135
    %v137 = vsel %vm46, %v115, 0.0
    %138 = vadd.xlane.f32.xlu0 %v137
    %v139 = vpop.xlane.xlu0 %138
    %v140 = vsel %vm46, %v116, 0.0
    %141 = vadd.xlane.f32.xlu0 %v140
    %v142 = vpop.xlane.xlu0 %141
    %v143 = vsel %vm46, %v117, 0.0
    %144 = vadd.xlane.f32.xlu0 %v143
    %v145 = vpop.xlane.xlu0 %144
    %v146 = vsel %vm46, %v118, 0.0
    %147 = vadd.xlane.f32.xlu0 %v146
    %v148 = vpop.xlane.xlu0 %147
    %v149 = vsel %vm46, %v119, 0.0
    %150 = vadd.xlane.f32.xlu0 %v149
    %v151 = vpop.xlane.xlu0 %150
    %v152 = vsel %vm46, %v120, 0.0
    %153 = vadd.xlane.f32.xlu0 %v152
    %v154 = vpop.xlane.xlu0 %153
    %v155 = vsel %vm46, %v121, 0.0
    %156 = vadd.xlane.f32.xlu0 %v155
    %v157 = vpop.xlane.xlu0 %156
    %v158 = vsel %vm46, %v122, 0.0
    %159 = vadd.xlane.f32.xlu0 %v158
    %v160 = vpop.xlane.xlu0 %159
    %v161 = vsel %vm46, %v123, 0.0
    %162 = vadd.xlane.f32.xlu0 %v161
    %v163 = vpop.xlane.xlu0 %162
    %v164 = vsel %vm46, %v124, 0.0
    %165 = vadd.xlane.f32.xlu0 %v164
    %v166 = vpop.xlane.xlu0 %165
    %v167 = vsel %vm46, %v125, 0.0
    %168 = vadd.xlane.f32.xlu0 %v167
    %v169 = vpop.xlane.xlu0 %168
    %v170 = vsel %vm46, %v126, 0.0
    %171 = vadd.xlane.f32.xlu0 %v170
    %v172 = vpop.xlane.xlu0 %171
    %v173 = vsel %vm46, %v127, 0.0
    %174 = vadd.xlane.f32.xlu0 %v173
    %v175 = vpop.xlane.xlu0 %174
    %v176 = vmul.f32 %v130, %v95
    %v177 = vmul.f32 %v133, %v95
    %v178 = vmul.f32 %v136, %v95
    %v179 = vmul.f32 %v139, %v95
    %v180 = vmul.f32 %v142, %v95
    %v181 = vmul.f32 %v145, %v95
    %v182 = vmul.f32 %v148, %v95
    %v183 = vmul.f32 %v151, %v95
    %v184 = vmul.f32 %v154, %v95
    %v185 = vmul.f32 %v157, %v95
    %v186 = vmul.f32 %v160, %v95
    %v187 = vmul.f32 %v163, %v95
    %v188 = vmul.f32 %v166, %v95
    %v189 = vmul.f32 %v169, %v95
    %v190 = vmul.f32 %v172, %v95
    %v191 = vmul.f32 %v175, %v95
    %v192 = vmul.f32 %v96, %v96
    %v193 = vmul.f32 %v97, %v97
    %v194 = vmul.f32 %v98, %v98
    %v195 = vmul.f32 %v99, %v99
    %v196 = vmul.f32 %v100, %v100
    %v197 = vmul.f32 %v101, %v101
    %v198 = vmul.f32 %v102, %v102
    %v199 = vmul.f32 %v103, %v103
    %v200 = vmul.f32 %v104, %v104
    %v201 = vmul.f32 %v105, %v105
    %v202 = vmul.f32 %v106, %v106
    %v203 = vmul.f32 %v107, %v107
    %v204 = vmul.f32 %v108, %v108
    %v205 = vmul.f32 %v109, %v109
    %v206 = vmul.f32 %v110, %v110
    %v207 = vmul.f32 %v111, %v111
    %v208 = vsub.f32 %v176, %v192
    %v209 = vsub.f32 %v177, %v193
    %v210 = vsub.f32 %v178, %v194
    %v211 = vsub.f32 %v179, %v195
    %v212 = vsub.f32 %v180, %v196
    %v213 = vsub.f32 %v181, %v197
    %v214 = vsub.f32 %v182, %v198
    %v215 = vsub.f32 %v183, %v199
    %v216 = vsub.f32 %v184, %v200
    %v217 = vsub.f32 %v185, %v201
    %v218 = vsub.f32 %v186, %v202
    %v219 = vsub.f32 %v187, %v203
    %v220 = vsub.f32 %v188, %v204
    %v221 = vsub.f32 %v189, %v205
    %v222 = vsub.f32 %v190, %v206
    %v223 = vsub.f32 %v191, %v207
    %v224 = vsub.f32 %v30, %v96
    %v225 = vsub.f32 %v31, %v97
    %v226 = vsub.f32 %v32, %v98
    %v227 = vsub.f32 %v33, %v99
    %v228 = vsub.f32 %v34, %v100
    %v229 = vsub.f32 %v35, %v101
    %v230 = vsub.f32 %v36, %v102
    %v231 = vsub.f32 %v37, %v103
    %v232 = vsub.f32 %v38, %v104
    %v233 = vsub.f32 %v39, %v105
    %v234 = vsub.f32 %v40, %v106
    %v235 = vsub.f32 %v41, %v107
    %v236 = vsub.f32 %v42, %v108
    %v237 = vsub.f32 %v43, %v109
    %v238 = vsub.f32 %v44, %v110
    %v239 = vsub.f32 %v45, %v111
    %v240 = vadd.f32 %v208, 1e-05
    %v241 = vadd.f32 %v209, 1e-05
    %v242 = vadd.f32 %v210, 1e-05
    %v243 = vadd.f32 %v211, 1e-05
    %v244 = vadd.f32 %v212, 1e-05
    %v245 = vadd.f32 %v213, 1e-05
    %v246 = vadd.f32 %v214, 1e-05
    %v247 = vadd.f32 %v215, 1e-05
    %v248 = vadd.f32 %v216, 1e-05
    %v249 = vadd.f32 %v217, 1e-05
    %v250 = vadd.f32 %v218, 1e-05
    %v251 = vadd.f32 %v219, 1e-05
    %v252 = vadd.f32 %v220, 1e-05
    %v253 = vadd.f32 %v221, 1e-05
    %v254 = vadd.f32 %v222, 1e-05
    %v255 = vadd.f32 %v223, 1e-05
    %v256 = vrsqrt.pop %v240
    %v257 = vrsqrt.pop %v241
    %v258 = vrsqrt.pop %v242
    %v259 = vrsqrt.pop %v243
    %v260 = vrsqrt.pop %v244
    %v261 = vrsqrt.pop %v245
    %v262 = vrsqrt.pop %v246
    %v263 = vrsqrt.pop %v247
    %v264 = vrsqrt.pop %v248
    %v265 = vrsqrt.pop %v249
    %v266 = vrsqrt.pop %v250
    %v267 = vrsqrt.pop %v251
    %v268 = vrsqrt.pop %v252
    %v269 = vrsqrt.pop %v253
    %v270 = vrsqrt.pop %v254
    %v271 = vrsqrt.pop %v255
    %v272 = vmul.f32 %v224, %v256
    %v273 = vmul.f32 %v225, %v257
    %v274 = vmul.f32 %v226, %v258
    %v275 = vmul.f32 %v227, %v259
    %v276 = vmul.f32 %v228, %v260
    %v277 = vmul.f32 %v229, %v261
    %v278 = vmul.f32 %v230, %v262
    %v279 = vmul.f32 %v231, %v263
    %v280 = vmul.f32 %v232, %v264
    %v281 = vmul.f32 %v233, %v265
    %v282 = vmul.f32 %v234, %v266
    %v283 = vmul.f32 %v235, %v267
    %v284 = vmul.f32 %v236, %v268
    %v285 = vmul.f32 %v237, %v269
    %v286 = vmul.f32 %v238, %v270
    %v287 = vmul.f32 %v239, %v271
    %v288 = vld [vmem:[%s5] sm:$0x1]
    %v290 = vlaneseq
    %v291 = vshrl.u32 %v290, 7
    %v292 = vsub.s32 0, %v291
    %v293 = vrot.slane %v288, %v292
    %v295 = vmul.f32 %v272, %v293
    %v296 = vmul.f32 %v273, %v293
    %v297 = vmul.f32 %v274, %v293
    %v298 = vmul.f32 %v275, %v293
    %v299 = vmul.f32 %v276, %v293
    %v300 = vmul.f32 %v277, %v293
    %v301 = vmul.f32 %v278, %v293
    %v302 = vmul.f32 %v279, %v293
    %v303 = vmul.f32 %v280, %v293
    %v304 = vmul.f32 %v281, %v293
    %v305 = vmul.f32 %v282, %v293
    %v306 = vmul.f32 %v283, %v293
    %v307 = vmul.f32 %v284, %v293
    %v308 = vmul.f32 %v285, %v293
    %v309 = vmul.f32 %v286, %v293
    %v310 = vmul.f32 %v287, %v293
    %v311 = vld [vmem:[%s6] sm:$0x1]
    %v313 = vlaneseq
    %v314 = vshrl.u32 %v313, 7
    %v315 = vsub.s32 0, %v314
    %v316 = vrot.slane %v311, %v315
    %v318 = vadd.f32 %v295, %v316
    %v319 = vadd.f32 %v296, %v316
    %v320 = vadd.f32 %v297, %v316
    %v321 = vadd.f32 %v298, %v316
    %v322 = vadd.f32 %v299, %v316
    %v323 = vadd.f32 %v300, %v316
    %v324 = vadd.f32 %v301, %v316
    %v325 = vadd.f32 %v302, %v316
    %v326 = vadd.f32 %v303, %v316
    %v327 = vadd.f32 %v304, %v316
    %v328 = vadd.f32 %v305, %v316
    %v329 = vadd.f32 %v306, %v316
    %v330 = vadd.f32 %v307, %v316
    %v331 = vadd.f32 %v308, %v316
    %v332 = vadd.f32 %v309, %v316
    %v333 = vadd.f32 %v310, %v316
    %334 = vst.msk [vmem:[#allocation2] sm:$0xff] %vm46, %v318
    %335 = vst.msk [vmem:[#allocation2 + $0x8] sm:$0xff] %vm46, %v319
    %336 = vst.msk [vmem:[#allocation2 + $0x10] sm:$0xff] %vm46, %v320
    %337 = vst.msk [vmem:[#allocation2 + $0x18] sm:$0xff] %vm46, %v321
    %338 = vst.msk [vmem:[#allocation2 + $0x20] sm:$0xff] %vm46, %v322
    %339 = vst.msk [vmem:[#allocation2 + $0x28] sm:$0xff] %vm46, %v323
    %340 = vst.msk [vmem:[#allocation2 + $0x30] sm:$0xff] %vm46, %v324
    %341 = vst.msk [vmem:[#allocation2 + $0x38] sm:$0xff] %vm46, %v325
    %342 = vst.msk [vmem:[#allocation2 + $0x40] sm:$0xff] %vm46, %v326
    %343 = vst.msk [vmem:[#allocation2 + $0x48] sm:$0xff] %vm46, %v327
    %344 = vst.msk [vmem:[#allocation2 + $0x50] sm:$0xff] %vm46, %v328
    %345 = vst.msk [vmem:[#allocation2 + $0x58] sm:$0xff] %vm46, %v329
    %346 = vst.msk [vmem:[#allocation2 + $0x60] sm:$0xff] %vm46, %v330
    %347 = vst.msk [vmem:[#allocation2 + $0x68] sm:$0xff] %vm46, %v331
    %348 = vst.msk [vmem:[#allocation2 + $0x70] sm:$0xff] %vm46, %v332
    %349 = vst.msk [vmem:[#allocation2 + $0x78] sm:$0xff] %vm46, %v333
    %350 = vst.msk [vmem:[#allocation3] sm:$0xff] %vm46, %v30
    %351 = vst.msk [vmem:[#allocation3 + $0x8] sm:$0xff] %vm46, %v31
    %352 = vst.msk [vmem:[#allocation3 + $0x10] sm:$0xff] %vm46, %v32
    %353 = vst.msk [vmem:[#allocation3 + $0x18] sm:$0xff] %vm46, %v33
    %354 = vst.msk [vmem:[#allocation3 + $0x20] sm:$0xff] %vm46, %v34
    %355 = vst.msk [vmem:[#allocation3 + $0x28] sm:$0xff] %vm46, %v35
    %356 = vst.msk [vmem:[#allocation3 + $0x30] sm:$0xff] %vm46, %v36
    %357 = vst.msk [vmem:[#allocation3 + $0x38] sm:$0xff] %vm46, %v37
    %358 = vst.msk [vmem:[#allocation3 + $0x40] sm:$0xff] %vm46, %v38
    %359 = vst.msk [vmem:[#allocation3 + $0x48] sm:$0xff] %vm46, %v39
    %360 = vst.msk [vmem:[#allocation3 + $0x50] sm:$0xff] %vm46, %v40
    %361 = vst.msk [vmem:[#allocation3 + $0x58] sm:$0xff] %vm46, %v41
    %362 = vst.msk [vmem:[#allocation3 + $0x60] sm:$0xff] %vm46, %v42
    %363 = vst.msk [vmem:[#allocation3 + $0x68] sm:$0xff] %vm46, %v43
    %364 = vst.msk [vmem:[#allocation3 + $0x70] sm:$0xff] %vm46, %v44
    %365 = vst.msk [vmem:[#allocation3 + $0x78] sm:$0xff] %vm46, %v45
  $region33: #{pre_ln_ffn.1} parent=0 // pred_fallthru
    _
  %v366 = vld [vmem:[#allocation2] sm:$0xff]
  %v367 = vld [vmem:[#allocation2 + $0x8] sm:$0xff]
  %v368 = vld [vmem:[#allocation2 + $0x10] sm:$0xff]
  %v369 = vld [vmem:[#allocation2 + $0x18] sm:$0xff]
  %v370 = vld [vmem:[#allocation2 + $0x20] sm:$0xff]
  %v371 = vld [vmem:[#allocation2 + $0x28] sm:$0xff]
  %v372 = vld [vmem:[#allocation2 + $0x30] sm:$0xff]
  %v373 = vld [vmem:[#allocation2 + $0x38] sm:$0xff]
  %v374 = vld [vmem:[#allocation2 + $0x40] sm:$0xff]
  %v375 = vld [vmem:[#allocation2 + $0x48] sm:$0xff]
  %v376 = vld [vmem:[#allocation2 + $0x50] sm:$0xff]
  %v377 = vld [vmem:[#allocation2 + $0x58] sm:$0xff]
  %v378 = vld [vmem:[#allocation2 + $0x60] sm:$0xff]
  %v379 = vld [vmem:[#allocation2 + $0x68] sm:$0xff]
  %v380 = vld [vmem:[#allocation2 + $0x70] sm:$0xff]
  %v381 = vld [vmem:[#allocation2 + $0x78] sm:$0xff]
  %v382 = vld [vmem:[%s1] sm:$0xff]
  %v383 = vld [vmem:[%s1 + $0x8] sm:$0xff]
  %v384 = vld [vmem:[%s1 + $0x10] sm:$0xff]
  %v385 = vld [vmem:[%s1 + $0x18] sm:$0xff]
  %v386 = vld [vmem:[%s1 + $0x20] sm:$0xff]
  %v387 = vld [vmem:[%s1 + $0x28] sm:$0xff]
  %v388 = vld [vmem:[%s1 + $0x30] sm:$0xff]
  %v389 = vld [vmem:[%s1 + $0x38] sm:$0xff]
  %v390 = vld [vmem:[%s2] sm:$0x1]
  %v392 = vlaneseq
  %v393 = vshrl.u32 %v392, 7
  %v394 = vsub.s32 0, %v393
  %v395 = vrot.slane %v390, %v394
  %vm397 = vcmask 261120
  %v399 = vsel %vm397, %v366, 0
  %v402 = vsel %vm397, %v367, 0
  %v405 = vsel %vm397, %v368, 0
  %v408 = vsel %vm397, %v369, 0
  %v411 = vsel %vm397, %v370, 0
  %v414 = vsel %vm397, %v371, 0
  %v417 = vsel %vm397, %v372, 0
  %v420 = vsel %vm397, %v373, 0
  %v423 = vsel %vm397, %v374, 0
  %v426 = vsel %vm397, %v375, 0
  %v429 = vsel %vm397, %v376, 0
  %v432 = vsel %vm397, %v377, 0
  %v435 = vsel %vm397, %v378, 0
  %v438 = vsel %vm397, %v379, 0
  %v441 = vsel %vm397, %v380, 0
  %v444 = vsel %vm397, %v381, 0
  %v447 = vsel %vm397, %v382, 0
  %v450 = vsel %vm397, %v383, 0
  %v453 = vsel %vm397, %v384, 0
  %v456 = vsel %vm397, %v385, 0
  %v459 = vsel %vm397, %v386, 0
  %v462 = vsel %vm397, %v387, 0
  %v465 = vsel %vm397, %v388, 0
  %v468 = vsel %vm397, %v389, 0
  %470 = vmatprep.subr.mxu0 0.0
  %471 = vmatpush1.xpose.msra.mxu0 0.0
  %472 = vmatprep.subr.mxu0 0.0
  %473 = vmatpush1.xpose.msra.mxu0 0.0
  %474 = vmatprep.subr.mxu0 0.0
  %475 = vmatpush1.xpose.msra.mxu0 0.0
  %476 = vmatprep.subr.mxu0 0.0
  %477 = vmatpush1.xpose.msra.mxu0 0.0
  %478 = vmatprep.subr.mxu0 0.0
  %479 = vmatpush1.xpose.msra.mxu0 0.0
  %480 = vmatprep.subr.mxu0 0.0
  %481 = vmatpush1.xpose.msra.mxu0 0.0
  %482 = vmatprep.subr.mxu0 0.0
  %483 = vmatpush1.xpose.msra.mxu0 0.0
  %484 = vmatprep.subr.mxu0 0.0
  %485 = vmatpush1.xpose.msra.mxu0 0.0
  %486 = vmatprep.subr.mxu0 0.0
  %487 = vmatpush1.xpose.msra.mxu0 %v468
  %488 = vmatprep.subr.mxu0 0.0
  %489 = vmatpush1.xpose.msra.mxu0 %v465
  %490 = vmatprep.subr.mxu0 0.0
  %491 = vmatpush1.xpose.msra.mxu0 %v462
  %492 = vmatprep.subr.mxu0 0.0
  %493 = vmatpush1.xpose.msra.mxu0 %v459
  %494 = vmatprep.subr.mxu0 0.0
  %495 = vmatpush1.xpose.msra.mxu0 %v456
  %496 = vmatprep.subr.mxu0 0.0
  %497 = vmatpush1.xpose.msra.mxu0 %v453
  %498 = vmatprep.subr.mxu0 0.0
  %499 = vmatpush1.xpose.msra.mxu0 %v450
  %500 = vmatprep.subr.mxu0 0.0
  %501 = vmatpush1.xpose.msra.mxu0 %v447
  %502 = vmatprep.subr.mxu0 0.0
  %503 = vmatpush2.xpose.msra.mxu0 0.0
  %504 = vmatprep.subr.mxu0 0.0
  %505 = vmatpush2.xpose.msra.mxu0 0.0
  %506 = vmatprep.subr.mxu0 0.0
  %507 = vmatpush2.xpose.msra.mxu0 0.0
  %508 = vmatprep.subr.mxu0 0.0
  %509 = vmatpush2.xpose.msra.mxu0 0.0
  %510 = vmatprep.subr.mxu0 0.0
  %511 = vmatpush2.xpose.msra.mxu0 0.0
  %512 = vmatprep.subr.mxu0 0.0
  %513 = vmatpush2.xpose.msra.mxu0 0.0
  %514 = vmatprep.subr.mxu0 0.0
  %515 = vmatpush2.xpose.msra.mxu0 0.0
  %516 = vmatprep.subr.mxu0 0.0
  %517 = vmatpush2.xpose.msra.mxu0 0.0
  %518 = vmatprep.subr.mxu0 0.0
  %519 = vmatpush2.xpose.msra.mxu0 0.0
  %520 = vmatprep.subr.mxu0 0.0
  %521 = vmatpush2.xpose.msra.mxu0 0.0
  %522 = vmatprep.subr.mxu0 0.0
  %523 = vmatpush2.xpose.msra.mxu0 0.0
  %524 = vmatprep.subr.mxu0 0.0
  %525 = vmatpush2.xpose.msra.mxu0 0.0
  %526 = vmatprep.subr.mxu0 0.0
  %527 = vmatpush2.xpose.msra.mxu0 0.0
  %528 = vmatprep.subr.mxu0 0.0
  %529 = vmatpush2.xpose.msra.mxu0 0.0
  %530 = vmatprep.subr.mxu0 0.0
  %531 = vmatpush2.xpose.msra.mxu0 0.0
  %532 = vmatprep.subr.mxu0 0.0
  %533 = vmatpush2.xpose.msra.mxu0 0.0
  %534 = vmatprep.mubr.f32.mxu0 0.0
  %535 = vmatmul.mubr.f32.gmra.mxu0 %v399
  %v536 = vpop.f32.mrf.mxu0
  %v537 = vadd.f32 %v395, %v536
  %v538 = vpop.f32.mrf.mxu0
  %539 = vmatprep.mubr.f32.mxu0 0.0
  %540 = vmatmul.mubr.f32.gmra.mxu0 %v402
  %v541 = vpop.f32.mrf.mxu0
  %v542 = vadd.f32 %v395, %v541
  %v543 = vpop.f32.mrf.mxu0
  %544 = vmatprep.mubr.f32.mxu0 0.0
  %545 = vmatmul.mubr.f32.gmra.mxu0 %v405
  %v546 = vpop.f32.mrf.mxu0
  %v547 = vadd.f32 %v395, %v546
  %v548 = vpop.f32.mrf.mxu0
  %549 = vmatprep.mubr.f32.mxu0 0.0
  %550 = vmatmul.mubr.f32.gmra.mxu0 %v408
  %v551 = vpop.f32.mrf.mxu0
  %v552 = vadd.f32 %v395, %v551
  %v553 = vpop.f32.mrf.mxu0
  %554 = vmatprep.mubr.f32.mxu0 0.0
  %555 = vmatmul.mubr.f32.gmra.mxu0 %v411
  %v556 = vpop.f32.mrf.mxu0
  %v557 = vadd.f32 %v395, %v556
  %v558 = vpop.f32.mrf.mxu0
  %559 = vmatprep.mubr.f32.mxu0 0.0
  %560 = vmatmul.mubr.f32.gmra.mxu0 %v414
  %v561 = vpop.f32.mrf.mxu0
  %v562 = vadd.f32 %v395, %v561
  %v563 = vpop.f32.mrf.mxu0
  %564 = vmatprep.mubr.f32.mxu0 0.0
  %565 = vmatmul.mubr.f32.gmra.mxu0 %v417
  %v566 = vpop.f32.mrf.mxu0
  %v567 = vadd.f32 %v395, %v566
  %v568 = vpop.f32.mrf.mxu0
  %569 = vmatprep.mubr.f32.mxu0 0.0
  %570 = vmatmul.mubr.f32.gmra.mxu0 %v420
  %v571 = vpop.f32.mrf.mxu0
  %v572 = vadd.f32 %v395, %v571
  %v573 = vpop.f32.mrf.mxu0
  %574 = vmatprep.mubr.f32.mxu0 0.0
  %575 = vmatmul.mubr.f32.gmra.mxu0 %v423
  %v576 = vpop.f32.mrf.mxu0
  %v577 = vadd.f32 %v395, %v576
  %v578 = vpop.f32.mrf.mxu0
  %579 = vmatprep.mubr.f32.mxu0 0.0
  %580 = vmatmul.mubr.f32.gmra.mxu0 %v426
  %v581 = vpop.f32.mrf.mxu0
  %v582 = vadd.f32 %v395, %v581
  %v583 = vpop.f32.mrf.mxu0
  %584 = vmatprep.mubr.f32.mxu0 0.0
  %585 = vmatmul.mubr.f32.gmra.mxu0 %v429
  %v586 = vpop.f32.mrf.mxu0
  %v587 = vadd.f32 %v395, %v586
  %v588 = vpop.f32.mrf.mxu0
  %589 = vmatprep.mubr.f32.mxu0 0.0
  %590 = vmatmul.mubr.f32.gmra.mxu0 %v432
  %v591 = vpop.f32.mrf.mxu0
  %v592 = vadd.f32 %v395, %v591
  %v593 = vpop.f32.mrf.mxu0
  %594 = vmatprep.mubr.f32.mxu0 0.0
  %595 = vmatmul.mubr.f32.gmra.mxu0 %v435
  %v596 = vpop.f32.mrf.mxu0
  %v597 = vadd.f32 %v395, %v596
  %v598 = vpop.f32.mrf.mxu0
  %599 = vmatprep.mubr.f32.mxu0 0.0
  %600 = vmatmul.mubr.f32.gmra.mxu0 %v438
  %v601 = vpop.f32.mrf.mxu0
  %v602 = vadd.f32 %v395, %v601
  %v603 = vpop.f32.mrf.mxu0
  %604 = vmatprep.mubr.f32.mxu0 0.0
  %605 = vmatmul.mubr.f32.gmra.mxu0 %v441
  %v606 = vpop.f32.mrf.mxu0
  %v607 = vadd.f32 %v395, %v606
  %v608 = vpop.f32.mrf.mxu0
  %609 = vmatprep.mubr.f32.mxu0 0.0
  %610 = vmatmul.mubr.f32.gmra.mxu0 %v444
  %v611 = vpop.f32.mrf.mxu0
  %v612 = vadd.f32 %v395, %v611
  %v613 = vpop.f32.mrf.mxu0
  %614 = vdwg.mxu0
  %v615 = vmul.f32 %v537, 0.5
  %v616 = vmul.f32 %v542, 0.5
  %v617 = vmul.f32 %v547, 0.5
  %v618 = vmul.f32 %v552, 0.5
  %v619 = vmul.f32 %v557, 0.5
  %v620 = vmul.f32 %v562, 0.5
  %v621 = vmul.f32 %v567, 0.5
  %v622 = vmul.f32 %v572, 0.5
  %v623 = vmul.f32 %v577, 0.5
  %v624 = vmul.f32 %v582, 0.5
  %v625 = vmul.f32 %v587, 0.5
  %v626 = vmul.f32 %v592, 0.5
  %v627 = vmul.f32 %v597, 0.5
  %v628 = vmul.f32 %v602, 0.5
  %v629 = vmul.f32 %v607, 0.5
  %v630 = vmul.f32 %v612, 0.5
  %v631 = vmul.f32 %v537, 0.70710677
  %v632 = vmul.f32 %v542, 0.70710677
  %v633 = vmul.f32 %v547, 0.70710677
  %v634 = vmul.f32 %v552, 0.70710677
  %v635 = vmul.f32 %v557, 0.70710677
  %v636 = vmul.f32 %v562, 0.70710677
  %v637 = vmul.f32 %v567, 0.70710677
  %v638 = vmul.f32 %v572, 0.70710677
  %v639 = vmul.f32 %v577, 0.70710677
  %v640 = vmul.f32 %v582, 0.70710677
  %v641 = vmul.f32 %v587, 0.70710677
  %v642 = vmul.f32 %v592, 0.70710677
  %v643 = vmul.f32 %v597, 0.70710677
  %v644 = vmul.f32 %v602, 0.70710677
  %v645 = vmul.f32 %v607, 0.70710677
  %v646 = vmul.f32 %v612, 0.70710677
  %v647 = vand.u32 2147483647, %v631
  %v648 = vand.u32 2147483647, %v632
  %v649 = vand.u32 2147483647, %v633
  %v650 = vand.u32 2147483647, %v634
  %v651 = vand.u32 2147483647, %v635
  %v652 = vand.u32 2147483647, %v636
  %v653 = vand.u32 2147483647, %v637
  %v654 = vand.u32 2147483647, %v638
  %v655 = vand.u32 2147483647, %v639
  %v656 = vand.u32 2147483647, %v640
  %v657 = vand.u32 2147483647, %v641
  %v658 = vand.u32 2147483647, %v642
  %v659 = vand.u32 2147483647, %v643
  %v660 = vand.u32 2147483647, %v644
  %v661 = vand.u32 2147483647, %v645
  %v662 = vand.u32 2147483647, %v646
  %v663 = vmul.f32 %v647, 0.5
  %v664 = vmul.f32 %v648, 0.5
  %v665 = vmul.f32 %v649, 0.5
  %v666 = vmul.f32 %v650, 0.5
  %v667 = vmul.f32 %v651, 0.5
  %v668 = vmul.f32 %v652, 0.5
  %v669 = vmul.f32 %v653, 0.5
  %v670 = vmul.f32 %v654, 0.5
  %v671 = vmul.f32 %v655, 0.5
  %v672 = vmul.f32 %v656, 0.5
  %v673 = vmul.f32 %v657, 0.5
  %v674 = vmul.f32 %v658, 0.5
  %v675 = vmul.f32 %v659, 0.5
  %v676 = vmul.f32 %v660, 0.5
  %v677 = vmul.f32 %v661, 0.5
  %v678 = vmul.f32 %v662, 0.5
  %v679 = vadd.f32 %v663, 1.0
  %v680 = vadd.f32 %v664, 1.0
  %v681 = vadd.f32 %v665, 1.0
  %v682 = vadd.f32 %v666, 1.0
  %v683 = vadd.f32 %v667, 1.0
  %v684 = vadd.f32 %v668, 1.0
  %v685 = vadd.f32 %v669, 1.0
  %v686 = vadd.f32 %v670, 1.0
  %v687 = vadd.f32 %v671, 1.0
  %v688 = vadd.f32 %v672, 1.0
  %v689 = vadd.f32 %v673, 1.0
  %v690 = vadd.f32 %v674, 1.0
  %v691 = vadd.f32 %v675, 1.0
  %v692 = vadd.f32 %v676, 1.0
  %v693 = vadd.f32 %v677, 1.0
  %v694 = vadd.f32 %v678, 1.0
  %v695 = vrcp.pop %v679
  %v696 = vmul.f32 1.0, %v695
  %v697 = vrcp.pop %v680
  %v698 = vmul.f32 1.0, %v697
  %v699 = vrcp.pop %v681
  %v700 = vmul.f32 1.0, %v699
  %v701 = vrcp.pop %v682
  %v702 = vmul.f32 1.0, %v701
  %v703 = vrcp.pop %v683
  %v704 = vmul.f32 1.0, %v703
  %v705 = vrcp.pop %v684
  %v706 = vmul.f32 1.0, %v705
  %v707 = vrcp.pop %v685
  %v708 = vmul.f32 1.0, %v707
  %v709 = vrcp.pop %v686
  %v710 = vmul.f32 1.0, %v709
  %v711 = vrcp.pop %v687
  %v712 = vmul.f32 1.0, %v711
  %v713 = vrcp.pop %v688
  %v714 = vmul.f32 1.0, %v713
  %v715 = vrcp.pop %v689
  %v716 = vmul.f32 1.0, %v715
  %v717 = vrcp.pop %v690
  %v718 = vmul.f32 1.0, %v717
  %v719 = vrcp.pop %v691
  %v720 = vmul.f32 1.0, %v719
  %v721 = vrcp.pop %v692
  %v722 = vmul.f32 1.0, %v721
  %v723 = vrcp.pop %v693
  %v724 = vmul.f32 1.0, %v723
  %v725 = vrcp.pop %v694
  %v726 = vmul.f32 1.0, %v725
  %v727 = vmul.f32 %v696, 0.17087276
  %v728 = vmul.f32 %v698, 0.17087276
  %v729 = vmul.f32 %v700, 0.17087276
  %v730 = vmul.f32 %v702, 0.17087276
  %v731 = vmul.f32 %v704, 0.17087276
  %v732 = vmul.f32 %v706, 0.17087276
  %v733 = vmul.f32 %v708, 0.17087276
  %v734 = vmul.f32 %v710, 0.17087276
  %v735 = vmul.f32 %v712, 0.17087276
  %v736 = vmul.f32 %v714, 0.17087276
  %v737 = vmul.f32 %v716, 0.17087276
  %v738 = vmul.f32 %v718, 0.17087276
  %v739 = vmul.f32 %v720, 0.17087276
  %v740 = vmul.f32 %v722, 0.17087276
  %v741 = vmul.f32 %v724, 0.17087276
  %v742 = vmul.f32 %v726, 0.17087276
  %v743 = vadd.f32 %v727, -0.82215226
  %v744 = vadd.f32 %v728, -0.82215226
  %v745 = vadd.f32 %v729, -0.82215226
  %v746 = vadd.f32 %v730, -0.82215226
  %v747 = vadd.f32 %v731, -0.82215226
  %v748 = vadd.f32 %v732, -0.82215226
  %v749 = vadd.f32 %v733, -0.82215226
  %v750 = vadd.f32 %v734, -0.82215226
  %v751 = vadd.f32 %v735, -0.82215226
  %v752 = vadd.f32 %v736, -0.82215226
  %v753 = vadd.f32 %v737, -0.82215226
  %v754 = vadd.f32 %v738, -0.82215226
  %v755 = vadd.f32 %v739, -0.82215226
  %v756 = vadd.f32 %v740, -0.82215226
  %v757 = vadd.f32 %v741, -0.82215226
  %v758 = vadd.f32 %v742, -0.82215226
  %v759 = vmul.f32 %v696, %v743
  %v760 = vmul.f32 %v698, %v744
  %v761 = vmul.f32 %v700, %v745
  %v762 = vmul.f32 %v702, %v746
  %v763 = vmul.f32 %v704, %v747
  %v764 = vmul.f32 %v706, %v748
  %v765 = vmul.f32 %v708, %v749
  %v766 = vmul.f32 %v710, %v750
  %v767 = vmul.f32 %v712, %v751
  %v768 = vmul.f32 %v714, %v752
  %v769 = vmul.f32 %v716, %v753
  %v770 = vmul.f32 %v718, %v754
  %v771 = vmul.f32 %v720, %v755
  %v772 = vmul.f32 %v722, %v756
  %v773 = vmul.f32 %v724, %v757
  %v774 = vmul.f32 %v726, %v758
  %v775 = vadd.f32 %v759, 1.4885159
  %v776 = vadd.f32 %v760, 1.4885159
  %v777 = vadd.f32 %v761, 1.4885159
  %v778 = vadd.f32 %v762, 1.4885159
  %v779 = vadd.f32 %v763, 1.4885159
  %v780 = vadd.f32 %v764, 1.4885159
  %v781 = vadd.f32 %v765, 1.4885159
  %v782 = vadd.f32 %v766, 1.4885159
  %v783 = vadd.f32 %v767, 1.4885159
  %v784 = vadd.f32 %v768, 1.4885159
  %v785 = vadd.f32 %v769, 1.4885159
  %v786 = vadd.f32 %v770, 1.4885159
  %v787 = vadd.f32 %v771, 1.4885159
  %v788 = vadd.f32 %v772, 1.4885159
  %v789 = vadd.f32 %v773, 1.4885159
  %v790 = vadd.f32 %v774, 1.4885159
  %v791 = vmul.f32 %v696, %v775
  %v792 = vmul.f32 %v698, %v776
  %v793 = vmul.f32 %v700, %v777
  %v794 = vmul.f32 %v702, %v778
  %v795 = vmul.f32 %v704, %v779
  %v796 = vmul.f32 %v706, %v780
  %v797 = vmul.f32 %v708, %v781
  %v798 = vmul.f32 %v710, %v782
  %v799 = vmul.f32 %v712, %v783
  %v800 = vmul.f32 %v714, %v784
  %v801 = vmul.f32 %v716, %v785
  %v802 = vmul.f32 %v718, %v786
  %v803 = vmul.f32 %v720, %v787
  %v804 = vmul.f32 %v722, %v788
  %v805 = vmul.f32 %v724, %v789
  %v806 = vmul.f32 %v726, %v790
  %v807 = vadd.f32 %v791, -1.135204
  %v808 = vadd.f32 %v792, -1.135204
  %v809 = vadd.f32 %v793, -1.135204
  %v810 = vadd.f32 %v794, -1.135204
  %v811 = vadd.f32 %v795, -1.135204
  %v812 = vadd.f32 %v796, -1.135204
  %v813 = vadd.f32 %v797, -1.135204
  %v814 = vadd.f32 %v798, -1.135204
  %v815 = vadd.f32 %v799, -1.135204
  %v816 = vadd.f32 %v800, -1.135204
  %v817 = vadd.f32 %v801, -1.135204
  %v818 = vadd.f32 %v802, -1.135204
  %v819 = vadd.f32 %v803, -1.135204
  %v820 = vadd.f32 %v804, -1.135204
  %v821 = vadd.f32 %v805, -1.135204
  %v822 = vadd.f32 %v806, -1.135204
  %v823 = vmul.f32 %v696, %v807
  %v824 = vmul.f32 %v698, %v808
  %v825 = vmul.f32 %v700, %v809
  %v826 = vmul.f32 %v702, %v810
  %v827 = vmul.f32 %v704, %v811
  %v828 = vmul.f32 %v706, %v812
  %v829 = vmul.f32 %v708, %v813
  %v830 = vmul.f32 %v710, %v814
  %v831 = vmul.f32 %v712, %v815
  %v832 = vmul.f32 %v714, %v816
  %v833 = vmul.f32 %v716, %v817
  %v834 = vmul.f32 %v718, %v818
  %v835 = vmul.f32 %v720, %v819
  %v836 = vmul.f32 %v722, %v820
  %v837 = vmul.f32 %v724, %v821
  %v838 = vmul.f32 %v726, %v822
  %v839 = vadd.f32 %v823, 0.27886808
  %v840 = vadd.f32 %v824, 0.27886808
  %v841 = vadd.f32 %v825, 0.27886808
  %v842 = vadd.f32 %v826, 0.27886808
  %v843 = vadd.f32 %v827, 0.27886808
  %v844 = vadd.f32 %v828, 0.27886808
  %v845 = vadd.f32 %v829, 0.27886808
  %v846 = vadd.f32 %v830, 0.27886808
  %v847 = vadd.f32 %v831, 0.27886808
  %v848 = vadd.f32 %v832, 0.27886808
  %v849 = vadd.f32 %v833, 0.27886808
  %v850 = vadd.f32 %v834, 0.27886808
  %v851 = vadd.f32 %v835, 0.27886808
  %v852 = vadd.f32 %v836, 0.27886808
  %v853 = vadd.f32 %v837, 0.27886808
  %v854 = vadd.f32 %v838, 0.27886808
  %v855 = vmul.f32 %v696, %v839
  %v856 = vmul.f32 %v698, %v840
  %v857 = vmul.f32 %v700, %v841
  %v858 = vmul.f32 %v702, %v842
  %v859 = vmul.f32 %v704, %v843
  %v860 = vmul.f32 %v706, %v844
  %v861 = vmul.f32 %v708, %v845
  %v862 = vmul.f32 %v710, %v846
  %v863 = vmul.f32 %v712, %v847
  %v864 = vmul.f32 %v714, %v848
  %v865 = vmul.f32 %v716, %v849
  %v866 = vmul.f32 %v718, %v850
  %v867 = vmul.f32 %v720, %v851
  %v868 = vmul.f32 %v722, %v852
  %v869 = vmul.f32 %v724, %v853
  %v870 = vmul.f32 %v726, %v854
  %v871 = vadd.f32 %v855, -0.18628806
  %v872 = vadd.f32 %v856, -0.18628806
  %v873 = vadd.f32 %v857, -0.18628806
  %v874 = vadd.f32 %v858, -0.18628806
  %v875 = vadd.f32 %v859, -0.18628806
  %v876 = vadd.f32 %v860, -0.18628806
  %v877 = vadd.f32 %v861, -0.18628806
  %v878 = vadd.f32 %v862, -0.18628806
  %v879 = vadd.f32 %v863, -0.18628806
  %v880 = vadd.f32 %v864, -0.18628806
  %v881 = vadd.f32 %v865, -0.18628806
  %v882 = vadd.f32 %v866, -0.18628806
  %v883 = vadd.f32 %v867, -0.18628806
  %v884 = vadd.f32 %v868, -0.18628806
  %v885 = vadd.f32 %v869, -0.18628806
  %v886 = vadd.f32 %v870, -0.18628806
  %v887 = vmul.f32 %v696, %v871
  %v888 = vmul.f32 %v698, %v872
  %v889 = vmul.f32 %v700, %v873
  %v890 = vmul.f32 %v702, %v874
  %v891 = vmul.f32 %v704, %v875
  %v892 = vmul.f32 %v706, %v876
  %v893 = vmul.f32 %v708, %v877
  %v894 = vmul.f32 %v710, %v878
  %v895 = vmul.f32 %v712, %v879
  %v896 = vmul.f32 %v714, %v880
  %v897 = vmul.f32 %v716, %v881
  %v898 = vmul.f32 %v718, %v882
  %v899 = vmul.f32 %v720, %v883
  %v900 = vmul.f32 %v722, %v884
  %v901 = vmul.f32 %v724, %v885
  %v902 = vmul.f32 %v726, %v886
  %v903 = vadd.f32 %v887, 0.09678418
  %v904 = vadd.f32 %v888, 0.09678418
  %v905 = vadd.f32 %v889, 0.09678418
  %v906 = vadd.f32 %v890, 0.09678418
  %v907 = vadd.f32 %v891, 0.09678418
  %v908 = vadd.f32 %v892, 0.09678418
  %v909 = vadd.f32 %v893, 0.09678418
  %v910 = vadd.f32 %v894, 0.09678418
  %v911 = vadd.f32 %v895, 0.09678418
  %v912 = vadd.f32 %v896, 0.09678418
  %v913 = vadd.f32 %v897, 0.09678418
  %v914 = vadd.f32 %v898, 0.09678418
  %v915 = vadd.f32 %v899, 0.09678418
  %v916 = vadd.f32 %v900, 0.09678418
  %v917 = vadd.f32 %v901, 0.09678418
  %v918 = vadd.f32 %v902, 0.09678418
  %v919 = vmul.f32 %v696, %v903
  %v920 = vmul.f32 %v698, %v904
  %v921 = vmul.f32 %v700, %v905
  %v922 = vmul.f32 %v702, %v906
  %v923 = vmul.f32 %v704, %v907
  %v924 = vmul.f32 %v706, %v908
  %v925 = vmul.f32 %v708, %v909
  %v926 = vmul.f32 %v710, %v910
  %v927 = vmul.f32 %v712, %v911
  %v928 = vmul.f32 %v714, %v912
  %v929 = vmul.f32 %v716, %v913
  %v930 = vmul.f32 %v718, %v914
  %v931 = vmul.f32 %v720, %v915
  %v932 = vmul.f32 %v722, %v916
  %v933 = vmul.f32 %v724, %v917
  %v934 = vmul.f32 %v726, %v918
  %v935 = vadd.f32 %v919, 0.37409195
  %v936 = vadd.f32 %v920, 0.37409195
  %v937 = vadd.f32 %v921, 0.37409195
  %v938 = vadd.f32 %v922, 0.37409195
  %v939 = vadd.f32 %v923, 0.37409195
  %v940 = vadd.f32 %v924, 0.37409195
  %v941 = vadd.f32 %v925, 0.37409195
  %v942 = vadd.f32 %v926, 0.37409195
  %v943 = vadd.f32 %v927, 0.37409195
  %v944 = vadd.f32 %v928, 0.37409195
  %v945 = vadd.f32 %v929, 0.37409195
  %v946 = vadd.f32 %v930, 0.37409195
  %v947 = vadd.f32 %v931, 0.37409195
  %v948 = vadd.f32 %v932, 0.37409195
  %v949 = vadd.f32 %v933, 0.37409195
  %v950 = vadd.f32 %v934, 0.37409195
  %v951 = vmul.f32 %v696, %v935
  %v952 = vmul.f32 %v698, %v936
  %v953 = vmul.f32 %v700, %v937
  %v954 = vmul.f32 %v702, %v938
  %v955 = vmul.f32 %v704, %v939
  %v956 = vmul.f32 %v706, %v940
  %v957 = vmul.f32 %v708, %v941
  %v958 = vmul.f32 %v710, %v942
  %v959 = vmul.f32 %v712, %v943
  %v960 = vmul.f32 %v714, %v944
  %v961 = vmul.f32 %v716, %v945
  %v962 = vmul.f32 %v718, %v946
  %v963 = vmul.f32 %v720, %v947
  %v964 = vmul.f32 %v722, %v948
  %v965 = vmul.f32 %v724, %v949
  %v966 = vmul.f32 %v726, %v950
  %v967 = vadd.f32 %v951, 1.0000237
  %v968 = vadd.f32 %v952, 1.0000237
  %v969 = vadd.f32 %v953, 1.0000237
  %v970 = vadd.f32 %v954, 1.0000237
  %v971 = vadd.f32 %v955, 1.0000237
  %v972 = vadd.f32 %v956, 1.0000237
  %v973 = vadd.f32 %v957, 1.0000237
  %v974 = vadd.f32 %v958, 1.0000237
  %v975 = vadd.f32 %v959, 1.0000237
  %v976 = vadd.f32 %v960, 1.0000237
  %v977 = vadd.f32 %v961, 1.0000237
  %v978 = vadd.f32 %v962, 1.0000237
  %v979 = vadd.f32 %v963, 1.0000237
  %v980 = vadd.f32 %v964, 1.0000237
  %v981 = vadd.f32 %v965, 1.0000237
  %v982 = vadd.f32 %v966, 1.0000237
  %v983 = vmul.f32 %v696, %v967
  %v984 = vmul.f32 %v698, %v968
  %v985 = vmul.f32 %v700, %v969
  %v986 = vmul.f32 %v702, %v970
  %v987 = vmul.f32 %v704, %v971
  %v988 = vmul.f32 %v706, %v972
  %v989 = vmul.f32 %v708, %v973
  %v990 = vmul.f32 %v710, %v974
  %v991 = vmul.f32 %v712, %v975
  %v992 = vmul.f32 %v714, %v976
  %v993 = vmul.f32 %v716, %v977
  %v994 = vmul.f32 %v718, %v978
  %v995 = vmul.f32 %v720, %v979
  %v996 = vmul.f32 %v722, %v980
  %v997 = vmul.f32 %v724, %v981
  %v998 = vmul.f32 %v726, %v982
  %v999 = vadd.f32 %v983, -1.2655122
  %v1000 = vadd.f32 %v984, -1.2655122
  %v1001 = vadd.f32 %v985, -1.2655122
  %v1002 = vadd.f32 %v986, -1.2655122
  %v1003 = vadd.f32 %v987, -1.2655122
  %v1004 = vadd.f32 %v988, -1.2655122
  %v1005 = vadd.f32 %v989, -1.2655122
  %v1006 = vadd.f32 %v990, -1.2655122
  %v1007 = vadd.f32 %v991, -1.2655122
  %v1008 = vadd.f32 %v992, -1.2655122
  %v1009 = vadd.f32 %v993, -1.2655122
  %v1010 = vadd.f32 %v994, -1.2655122
  %v1011 = vadd.f32 %v995, -1.2655122
  %v1012 = vadd.f32 %v996, -1.2655122
  %v1013 = vadd.f32 %v997, -1.2655122
  %v1014 = vadd.f32 %v998, -1.2655122
  %v1015 = vsub.f32 0.0, %v647
  %v1016 = vsub.f32 0.0, %v648
  %v1017 = vsub.f32 0.0, %v649
  %v1018 = vsub.f32 0.0, %v650
  %v1019 = vsub.f32 0.0, %v651
  %v1020 = vsub.f32 0.0, %v652
  %v1021 = vsub.f32 0.0, %v653
  %v1022 = vsub.f32 0.0, %v654
  %v1023 = vsub.f32 0.0, %v655
  %v1024 = vsub.f32 0.0, %v656
  %v1025 = vsub.f32 0.0, %v657
  %v1026 = vsub.f32 0.0, %v658
  %v1027 = vsub.f32 0.0, %v659
  %v1028 = vsub.f32 0.0, %v660
  %v1029 = vsub.f32 0.0, %v661
  %v1030 = vsub.f32 0.0, %v662
  %v1031 = vmul.f32 %v1015, %v647
  %v1032 = vmul.f32 %v1016, %v648
  %v1033 = vmul.f32 %v1017, %v649
  %v1034 = vmul.f32 %v1018, %v650
  %v1035 = vmul.f32 %v1019, %v651
  %v1036 = vmul.f32 %v1020, %v652
  %v1037 = vmul.f32 %v1021, %v653
  %v1038 = vmul.f32 %v1022, %v654
  %v1039 = vmul.f32 %v1023, %v655
  %v1040 = vmul.f32 %v1024, %v656
  %v1041 = vmul.f32 %v1025, %v657
  %v1042 = vmul.f32 %v1026, %v658
  %v1043 = vmul.f32 %v1027, %v659
  %v1044 = vmul.f32 %v1028, %v660
  %v1045 = vmul.f32 %v1029, %v661
  %v1046 = vmul.f32 %v1030, %v662
  %v1047 = vadd.f32 %v1031, %v999
  %v1048 = vadd.f32 %v1032, %v1000
  %v1049 = vadd.f32 %v1033, %v1001
  %v1050 = vadd.f32 %v1034, %v1002
  %v1051 = vadd.f32 %v1035, %v1003
  %v1052 = vadd.f32 %v1036, %v1004
  %v1053 = vadd.f32 %v1037, %v1005
  %v1054 = vadd.f32 %v1038, %v1006
  %v1055 = vadd.f32 %v1039, %v1007
  %v1056 = vadd.f32 %v1040, %v1008
  %v1057 = vadd.f32 %v1041, %v1009
  %v1058 = vadd.f32 %v1042, %v1010
  %v1059 = vadd.f32 %v1043, %v1011
  %v1060 = vadd.f32 %v1044, %v1012
  %v1061 = vadd.f32 %v1045, %v1013
  %v1062 = vadd.f32 %v1046, %v1014
  %v1063 = vmul.f32 %v1047, 1.442695
  %v1064 = vpow.pop %v1063
  %v1065 = vmul.f32 %v1048, 1.442695
  %v1066 = vpow.pop %v1065
  %v1067 = vmul.f32 %v1049, 1.442695
  %v1068 = vpow.pop %v1067
  %v1069 = vmul.f32 %v1050, 1.442695
  %v1070 = vpow.pop %v1069
  %v1071 = vmul.f32 %v1051, 1.442695
  %v1072 = vpow.pop %v1071
  %v1073 = vmul.f32 %v1052, 1.442695
  %v1074 = vpow.pop %v1073
  %v1075 = vmul.f32 %v1053, 1.442695
  %v1076 = vpow.pop %v1075
  %v1077 = vmul.f32 %v1054, 1.442695
  %v1078 = vpow.pop %v1077
  %v1079 = vmul.f32 %v1055, 1.442695
  %v1080 = vpow.pop %v1079
  %v1081 = vmul.f32 %v1056, 1.442695
  %v1082 = vpow.pop %v1081
  %v1083 = vmul.f32 %v1057, 1.442695
  %v1084 = vpow.pop %v1083
  %v1085 = vmul.f32 %v1058, 1.442695
  %v1086 = vpow.pop %v1085
  %v1087 = vmul.f32 %v1059, 1.442695
  %v1088 = vpow.pop %v1087
  %v1089 = vmul.f32 %v1060, 1.442695
  %v1090 = vpow.pop %v1089
  %v1091 = vmul.f32 %v1061, 1.442695
  %v1092 = vpow.pop %v1091
  %v1093 = vmul.f32 %v1062, 1.442695
  %v1094 = vpow.pop %v1093
  %v1095 = vmul.f32 %v696, %v1064
  %v1096 = vmul.f32 %v698, %v1066
  %v1097 = vmul.f32 %v700, %v1068
  %v1098 = vmul.f32 %v702, %v1070
  %v1099 = vmul.f32 %v704, %v1072
  %v1100 = vmul.f32 %v706, %v1074
  %v1101 = vmul.f32 %v708, %v1076
  %v1102 = vmul.f32 %v710, %v1078
  %v1103 = vmul.f32 %v712, %v1080
  %v1104 = vmul.f32 %v714, %v1082
  %v1105 = vmul.f32 %v716, %v1084
  %v1106 = vmul.f32 %v718, %v1086
  %v1107 = vmul.f32 %v720, %v1088
  %v1108 = vmul.f32 %v722, %v1090
  %v1109 = vmul.f32 %v724, %v1092
  %v1110 = vmul.f32 %v726, %v1094
  %vm1111 = vcmp.ge.f32.partialorder %v631, 0.0
  %vm1112 = vcmp.ge.f32.partialorder %v632, 0.0
  %vm1113 = vcmp.ge.f32.partialorder %v633, 0.0
  %vm1114 = vcmp.ge.f32.partialorder %v634, 0.0
  %vm1115 = vcmp.ge.f32.partialorder %v635, 0.0
  %vm1116 = vcmp.ge.f32.partialorder %v636, 0.0
  %vm1117 = vcmp.ge.f32.partialorder %v637, 0.0
  %vm1118 = vcmp.ge.f32.partialorder %v638, 0.0
  %vm1119 = vcmp.ge.f32.partialorder %v639, 0.0
  %vm1120 = vcmp.ge.f32.partialorder %v640, 0.0
  %vm1121 = vcmp.ge.f32.partialorder %v641, 0.0
  %vm1122 = vcmp.ge.f32.partialorder %v642, 0.0
  %vm1123 = vcmp.ge.f32.partialorder %v643, 0.0
  %vm1124 = vcmp.ge.f32.partialorder %v644, 0.0
  %vm1125 = vcmp.ge.f32.partialorder %v645, 0.0
  %vm1126 = vcmp.ge.f32.partialorder %v646, 0.0
  %v1127 = vsub.f32 1.0, %v1095
  %v1128 = vsub.f32 1.0, %v1096
  %v1129 = vsub.f32 1.0, %v1097
  %v1130 = vsub.f32 1.0, %v1098
  %v1131 = vsub.f32 1.0, %v1099
  %v1132 = vsub.f32 1.0, %v1100
  %v1133 = vsub.f32 1.0, %v1101
  %v1134 = vsub.f32 1.0, %v1102
  %v1135 = vsub.f32 1.0, %v1103
  %v1136 = vsub.f32 1.0, %v1104
  %v1137 = vsub.f32 1.0, %v1105
  %v1138 = vsub.f32 1.0, %v1106
  %v1139 = vsub.f32 1.0, %v1107
  %v1140 = vsub.f32 1.0, %v1108
  %v1141 = vsub.f32 1.0, %v1109
  %v1142 = vsub.f32 1.0, %v1110
  %v1143 = vsub.f32 %v1095, 1.0
  %v1144 = vsub.f32 %v1096, 1.0
  %v1145 = vsub.f32 %v1097, 1.0
  %v1146 = vsub.f32 %v1098, 1.0
  %v1147 = vsub.f32 %v1099, 1.0
  %v1148 = vsub.f32 %v1100, 1.0
  %v1149 = vsub.f32 %v1101, 1.0
  %v1150 = vsub.f32 %v1102, 1.0
  %v1151 = vsub.f32 %v1103, 1.0
  %v1152 = vsub.f32 %v1104, 1.0
  %v1153 = vsub.f32 %v1105, 1.0
  %v1154 = vsub.f32 %v1106, 1.0
  %v1155 = vsub.f32 %v1107, 1.0
  %v1156 = vsub.f32 %v1108, 1.0
  %v1157 = vsub.f32 %v1109, 1.0
  %v1158 = vsub.f32 %v1110, 1.0
  %v1159 = vsel %vm1111, %v1127, %v1143
  %v1160 = vsel %vm1112, %v1128, %v1144
  %v1161 = vsel %vm1113, %v1129, %v1145
  %v1162 = vsel %vm1114, %v1130, %v1146
  %v1163 = vsel %vm1115, %v1131, %v1147
  %v1164 = vsel %vm1116, %v1132, %v1148
  %v1165 = vsel %vm1117, %v1133, %v1149
  %v1166 = vsel %vm1118, %v1134, %v1150
  %v1167 = vsel %vm1119, %v1135, %v1151
  %v1168 = vsel %vm1120, %v1136, %v1152
  %v1169 = vsel %vm1121, %v1137, %v1153
  %v1170 = vsel %vm1122, %v1138, %v1154
  %v1171 = vsel %vm1123, %v1139, %v1155
  %v1172 = vsel %vm1124, %v1140, %v1156
  %v1173 = vsel %vm1125, %v1141, %v1157
  %v1174 = vsel %vm1126, %v1142, %v1158
  %v1175 = vadd.f32 %v1159, 1.0
  %v1176 = vadd.f32 %v1160, 1.0
  %v1177 = vadd.f32 %v1161, 1.0
  %v1178 = vadd.f32 %v1162, 1.0
  %v1179 = vadd.f32 %v1163, 1.0
  %v1180 = vadd.f32 %v1164, 1.0
  %v1181 = vadd.f32 %v1165, 1.0
  %v1182 = vadd.f32 %v1166, 1.0
  %v1183 = vadd.f32 %v1167, 1.0
  %v1184 = vadd.f32 %v1168, 1.0
  %v1185 = vadd.f32 %v1169, 1.0
  %v1186 = vadd.f32 %v1170, 1.0
  %v1187 = vadd.f32 %v1171, 1.0
  %v1188 = vadd.f32 %v1172, 1.0
  %v1189 = vadd.f32 %v1173, 1.0
  %v1190 = vadd.f32 %v1174, 1.0
  %v1191 = vmul.f32 %v615, %v1175
  %v1192 = vmul.f32 %v616, %v1176
  %v1193 = vmul.f32 %v617, %v1177
  %v1194 = vmul.f32 %v618, %v1178
  %v1195 = vmul.f32 %v619, %v1179
  %v1196 = vmul.f32 %v620, %v1180
  %v1197 = vmul.f32 %v621, %v1181
  %v1198 = vmul.f32 %v622, %v1182
  %v1199 = vmul.f32 %v623, %v1183
  %v1200 = vmul.f32 %v624, %v1184
  %v1201 = vmul.f32 %v625, %v1185
  %v1202 = vmul.f32 %v626, %v1186
  %v1203 = vmul.f32 %v627, %v1187
  %v1204 = vmul.f32 %v628, %v1188
  %v1205 = vmul.f32 %v629, %v1189
  %v1206 = vmul.f32 %v630, %v1190
  %v1207 = vld [vmem:[#allocation3] sm:$0xff]
  %v1208 = vld [vmem:[#allocation3 + $0x8] sm:$0xff]
  %v1209 = vld [vmem:[#allocation3 + $0x10] sm:$0xff]
  %v1210 = vld [vmem:[#allocation3 + $0x18] sm:$0xff]
  %v1211 = vld [vmem:[#allocation3 + $0x20] sm:$0xff]
  %v1212 = vld [vmem:[#allocation3 + $0x28] sm:$0xff]
  %v1213 = vld [vmem:[#allocation3 + $0x30] sm:$0xff]
  %v1214 = vld [vmem:[#allocation3 + $0x38] sm:$0xff]
  %v1215 = vld [vmem:[#allocation3 + $0x40] sm:$0xff]
  %v1216 = vld [vmem:[#allocation3 + $0x48] sm:$0xff]
  %v1217 = vld [vmem:[#allocation3 + $0x50] sm:$0xff]
  %v1218 = vld [vmem:[#allocation3 + $0x58] sm:$0xff]
  %v1219 = vld [vmem:[#allocation3 + $0x60] sm:$0xff]
  %v1220 = vld [vmem:[#allocation3 + $0x68] sm:$0xff]
  %v1221 = vld [vmem:[#allocation3 + $0x70] sm:$0xff]
  %v1222 = vld [vmem:[#allocation3 + $0x78] sm:$0xff]
  %v1223 = vld [vmem:[%s3] sm:$0xff]
  %v1224 = vld [vmem:[%s3 + $0x8] sm:$0xff]
  %v1225 = vld [vmem:[%s3 + $0x10] sm:$0xff]
  %v1226 = vld [vmem:[%s3 + $0x18] sm:$0xff]
  %vm1227 = vcmask 523264
  %v1229 = vsel %vm1227, %v1191, 0
  %v1232 = vsel %vm1227, %v1192, 0
  %v1235 = vsel %vm1227, %v1193, 0
  %v1238 = vsel %vm1227, %v1194, 0
  %v1241 = vsel %vm1227, %v1195, 0
  %v1244 = vsel %vm1227, %v1196, 0
  %v1247 = vsel %vm1227, %v1197, 0
  %v1250 = vsel %vm1227, %v1198, 0
  %v1253 = vsel %vm1227, %v1199, 0
  %v1256 = vsel %vm1227, %v1200, 0
  %v1259 = vsel %vm1227, %v1201, 0
  %v1262 = vsel %vm1227, %v1202, 0
  %v1265 = vsel %vm1227, %v1203, 0
  %v1268 = vsel %vm1227, %v1204, 0
  %v1271 = vsel %vm1227, %v1205, 0
  %v1274 = vsel %vm1227, %v1206, 0
  %v1277 = vsel %vm1227, %v1223, 0
  %v1280 = vsel %vm1227, %v1224, 0
  %v1283 = vsel %vm1227, %v1225, 0
  %v1286 = vsel %vm1227, %v1226, 0
  %1288 = vmatprep.subr.mxu0 0.0
  %1289 = vmatpush1.xpose.msra.mxu0 0.0
  %1290 = vmatprep.subr.mxu0 0.0
  %1291 = vmatpush1.xpose.msra.mxu0 0.0
  %1292 = vmatprep.subr.mxu0 0.0
  %1293 = vmatpush1.xpose.msra.mxu0 0.0
  %1294 = vmatprep.subr.mxu0 0.0
  %1295 = vmatpush1.xpose.msra.mxu0 0.0
  %1296 = vmatprep.subr.mxu0 0.0
  %1297 = vmatpush1.xpose.msra.mxu0 0.0
  %1298 = vmatprep.subr.mxu0 0.0
  %1299 = vmatpush1.xpose.msra.mxu0 0.0
  %1300 = vmatprep.subr.mxu0 0.0
  %1301 = vmatpush1.xpose.msra.mxu0 0.0
  %1302 = vmatprep.subr.mxu0 0.0
  %1303 = vmatpush1.xpose.msra.mxu0 0.0
  %1304 = vmatprep.subr.mxu0 0.0
  %1305 = vmatpush1.xpose.msra.mxu0 0.0
  %1306 = vmatprep.subr.mxu0 0.0
  %1307 = vmatpush1.xpose.msra.mxu0 0.0
  %1308 = vmatprep.subr.mxu0 0.0
  %1309 = vmatpush1.xpose.msra.mxu0 0.0
  %1310 = vmatprep.subr.mxu0 0.0
  %1311 = vmatpush1.xpose.msra.mxu0 0.0
  %1312 = vmatprep.subr.mxu0 0.0
  %1313 = vmatpush1.xpose.msra.mxu0 %v1286
  %1314 = vmatprep.subr.mxu0 0.0
  %1315 = vmatpush1.xpose.msra.mxu0 %v1283
  %1316 = vmatprep.subr.mxu0 0.0
  %1317 = vmatpush1.xpose.msra.mxu0 %v1280
  %1318 = vmatprep.subr.mxu0 0.0
  %1319 = vmatpush1.xpose.msra.mxu0 %v1277
  %1320 = vmatprep.subr.mxu0 0.0
  %1321 = vmatpush2.xpose.msra.mxu0 0.0
  %1322 = vmatprep.subr.mxu0 0.0
  %1323 = vmatpush2.xpose.msra.mxu0 0.0
  %1324 = vmatprep.subr.mxu0 0.0
  %1325 = vmatpush2.xpose.msra.mxu0 0.0
  %1326 = vmatprep.subr.mxu0 0.0
  %1327 = vmatpush2.xpose.msra.mxu0 0.0
  %1328 = vmatprep.subr.mxu0 0.0
  %1329 = vmatpush2.xpose.msra.mxu0 0.0
  %1330 = vmatprep.subr.mxu0 0.0
  %1331 = vmatpush2.xpose.msra.mxu0 0.0
  %1332 = vmatprep.subr.mxu0 0.0
  %1333 = vmatpush2.xpose.msra.mxu0 0.0
  %1334 = vmatprep.subr.mxu0 0.0
  %1335 = vmatpush2.xpose.msra.mxu0 0.0
  %1336 = vmatprep.subr.mxu0 0.0
  %1337 = vmatpush2.xpose.msra.mxu0 0.0
  %1338 = vmatprep.subr.mxu0 0.0
  %1339 = vmatpush2.xpose.msra.mxu0 0.0
  %1340 = vmatprep.subr.mxu0 0.0
  %1341 = vmatpush2.xpose.msra.mxu0 0.0
  %1342 = vmatprep.subr.mxu0 0.0
  %1343 = vmatpush2.xpose.msra.mxu0 0.0
  %1344 = vmatprep.subr.mxu0 0.0
  %1345 = vmatpush2.xpose.msra.mxu0 0.0
  %1346 = vmatprep.subr.mxu0 0.0
  %1347 = vmatpush2.xpose.msra.mxu0 0.0
  %1348 = vmatprep.subr.mxu0 0.0
  %1349 = vmatpush2.xpose.msra.mxu0 0.0
  %1350 = vmatprep.subr.mxu0 0.0
  %1351 = vmatpush2.xpose.msra.mxu0 0.0
  %1352 = vmatprep.mubr.f32.mxu0 0.0
  %1353 = vmatmul.mubr.f32.gmra.mxu0 %v1229
  %v1354 = vpop.f32.mrf.mxu0
  %v1355 = vadd.f32 0.0, %v1354
  %v1356 = vpop.f32.mrf.mxu0
  %1357 = vmatprep.mubr.f32.mxu0 0.0
  %1358 = vmatmul.mubr.f32.gmra.mxu0 %v1232
  %v1359 = vpop.f32.mrf.mxu0
  %v1360 = vadd.f32 0.0, %v1359
  %v1361 = vpop.f32.mrf.mxu0
  %1362 = vmatprep.mubr.f32.mxu0 0.0
  %1363 = vmatmul.mubr.f32.gmra.mxu0 %v1235
  %v1364 = vpop.f32.mrf.mxu0
  %v1365 = vadd.f32 0.0, %v1364
  %v1366 = vpop.f32.mrf.mxu0
  %1367 = vmatprep.mubr.f32.mxu0 0.0
  %1368 = vmatmul.mubr.f32.gmra.mxu0 %v1238
  %v1369 = vpop.f32.mrf.mxu0
  %v1370 = vadd.f32 0.0, %v1369
  %v1371 = vpop.f32.mrf.mxu0
  %1372 = vmatprep.mubr.f32.mxu0 0.0
  %1373 = vmatmul.mubr.f32.gmra.mxu0 %v1241
  %v1374 = vpop.f32.mrf.mxu0
  %v1375 = vadd.f32 0.0, %v1374
  %v1376 = vpop.f32.mrf.mxu0
  %1377 = vmatprep.mubr.f32.mxu0 0.0
  %1378 = vmatmul.mubr.f32.gmra.mxu0 %v1244
  %v1379 = vpop.f32.mrf.mxu0
  %v1380 = vadd.f32 0.0, %v1379
  %v1381 = vpop.f32.mrf.mxu0
  %1382 = vmatprep.mubr.f32.mxu0 0.0
  %1383 = vmatmul.mubr.f32.gmra.mxu0 %v1247
  %v1384 = vpop.f32.mrf.mxu0
  %v1385 = vadd.f32 0.0, %v1384
  %v1386 = vpop.f32.mrf.mxu0
  %1387 = vmatprep.mubr.f32.mxu0 0.0
  %1388 = vmatmul.mubr.f32.gmra.mxu0 %v1250
  %v1389 = vpop.f32.mrf.mxu0
  %v1390 = vadd.f32 0.0, %v1389
  %v1391 = vpop.f32.mrf.mxu0
  %1392 = vmatprep.mubr.f32.mxu0 0.0
  %1393 = vmatmul.mubr.f32.gmra.mxu0 %v1253
  %v1394 = vpop.f32.mrf.mxu0
  %v1395 = vadd.f32 0.0, %v1394
  %v1396 = vpop.f32.mrf.mxu0
  %1397 = vmatprep.mubr.f32.mxu0 0.0
  %1398 = vmatmul.mubr.f32.gmra.mxu0 %v1256
  %v1399 = vpop.f32.mrf.mxu0
  %v1400 = vadd.f32 0.0, %v1399
  %v1401 = vpop.f32.mrf.mxu0
  %1402 = vmatprep.mubr.f32.mxu0 0.0
  %1403 = vmatmul.mubr.f32.gmra.mxu0 %v1259
  %v1404 = vpop.f32.mrf.mxu0
  %v1405 = vadd.f32 0.0, %v1404
  %v1406 = vpop.f32.mrf.mxu0
  %1407 = vmatprep.mubr.f32.mxu0 0.0
  %1408 = vmatmul.mubr.f32.gmra.mxu0 %v1262
  %v1409 = vpop.f32.mrf.mxu0
  %v1410 = vadd.f32 0.0, %v1409
  %v1411 = vpop.f32.mrf.mxu0
  %1412 = vmatprep.mubr.f32.mxu0 0.0
  %1413 = vmatmul.mubr.f32.gmra.mxu0 %v1265
  %v1414 = vpop.f32.mrf.mxu0
  %v1415 = vadd.f32 0.0, %v1414
  %v1416 = vpop.f32.mrf.mxu0
  %1417 = vmatprep.mubr.f32.mxu0 0.0
  %1418 = vmatmul.mubr.f32.gmra.mxu0 %v1268
  %v1419 = vpop.f32.mrf.mxu0
  %v1420 = vadd.f32 0.0, %v1419
  %v1421 = vpop.f32.mrf.mxu0
  %1422 = vmatprep.mubr.f32.mxu0 0.0
  %1423 = vmatmul.mubr.f32.gmra.mxu0 %v1271
  %v1424 = vpop.f32.mrf.mxu0
  %v1425 = vadd.f32 0.0, %v1424
  %v1426 = vpop.f32.mrf.mxu0
  %1427 = vmatprep.mubr.f32.mxu0 0.0
  %1428 = vmatmul.mubr.f32.gmra.mxu0 %v1274
  %v1429 = vpop.f32.mrf.mxu0
  %v1430 = vadd.f32 0.0, %v1429
  %v1431 = vpop.f32.mrf.mxu0
  %1432 = vdwg.mxu0
  %v1433 = vadd.f32 %v1207, %v1355
  %v1434 = vadd.f32 %v1208, %v1360
  %v1435 = vadd.f32 %v1209, %v1365
  %v1436 = vadd.f32 %v1210, %v1370
  %v1437 = vadd.f32 %v1211, %v1375
  %v1438 = vadd.f32 %v1212, %v1380
  %v1439 = vadd.f32 %v1213, %v1385
  %v1440 = vadd.f32 %v1214, %v1390
  %v1441 = vadd.f32 %v1215, %v1395
  %v1442 = vadd.f32 %v1216, %v1400
  %v1443 = vadd.f32 %v1217, %v1405
  %v1444 = vadd.f32 %v1218, %v1410
  %v1445 = vadd.f32 %v1219, %v1415
  %v1446 = vadd.f32 %v1220, %v1420
  %v1447 = vadd.f32 %v1221, %v1425
  %v1448 = vadd.f32 %v1222, %v1430
  %1449 = vst.msk [vmem:[#allocation3] sm:$0xff] %vm397, %v1433
  %1450 = vst.msk [vmem:[#allocation3 + $0x8] sm:$0xff] %vm397, %v1434
  %1451 = vst.msk [vmem:[#allocation3 + $0x10] sm:$0xff] %vm397, %v1435
  %1452 = vst.msk [vmem:[#allocation3 + $0x18] sm:$0xff] %vm397, %v1436
  %1453 = vst.msk [vmem:[#allocation3 + $0x20] sm:$0xff] %vm397, %v1437
  %1454 = vst.msk [vmem:[#allocation3 + $0x28] sm:$0xff] %vm397, %v1438
  %1455 = vst.msk [vmem:[#allocation3 + $0x30] sm:$0xff] %vm397, %v1439
  %1456 = vst.msk [vmem:[#allocation3 + $0x38] sm:$0xff] %vm397, %v1440
  %1457 = vst.msk [vmem:[#allocation3 + $0x40] sm:$0xff] %vm397, %v1441
  %1458 = vst.msk [vmem:[#allocation3 + $0x48] sm:$0xff] %vm397, %v1442
  %1459 = vst.msk [vmem:[#allocation3 + $0x50] sm:$0xff] %vm397, %v1443
  %1460 = vst.msk [vmem:[#allocation3 + $0x58] sm:$0xff] %vm397, %v1444
  %1461 = vst.msk [vmem:[#allocation3 + $0x60] sm:$0xff] %vm397, %v1445
  %1462 = vst.msk [vmem:[#allocation3 + $0x68] sm:$0xff] %vm397, %v1446
  %1463 = vst.msk [vmem:[#allocation3 + $0x70] sm:$0xff] %vm397, %v1447
  %1464 = vst.msk [vmem:[#allocation3 + $0x78] sm:$0xff] %vm397, %v1448
  // Predicated region
  $region34: #{pre_ln_ffn.1} parent=0 // pred_check
    %p1465 = pneg %p26
  $region35: #{pre_ln_ffn.1} parent=0 // pred_check_branch
    %1467 = sbr.rel (%p1465) target = $region37
  $region36: #{pre_ln_ffn.1} parent=0 // pred_region
    %v1468 = vld [vmem:[#allocation3] sm:$0xff]
    %v1469 = vld [vmem:[#allocation3 + $0x8] sm:$0xff]
    %v1470 = vld [vmem:[#allocation3 + $0x10] sm:$0xff]
    %v1471 = vld [vmem:[#allocation3 + $0x18] sm:$0xff]
    %v1472 = vld [vmem:[#allocation3 + $0x20] sm:$0xff]
    %v1473 = vld [vmem:[#allocation3 + $0x28] sm:$0xff]
    %v1474 = vld [vmem:[#allocation3 + $0x30] sm:$0xff]
    %v1475 = vld [vmem:[#allocation3 + $0x38] sm:$0xff]
    %v1476 = vld [vmem:[#allocation3 + $0x40] sm:$0xff]
    %v1477 = vld [vmem:[#allocation3 + $0x48] sm:$0xff]
    %v1478 = vld [vmem:[#allocation3 + $0x50] sm:$0xff]
    %v1479 = vld [vmem:[#allocation3 + $0x58] sm:$0xff]
    %v1480 = vld [vmem:[#allocation3 + $0x60] sm:$0xff]
    %v1481 = vld [vmem:[#allocation3 + $0x68] sm:$0xff]
    %v1482 = vld [vmem:[#allocation3 + $0x70] sm:$0xff]
    %v1483 = vld [vmem:[#allocation3 + $0x78] sm:$0xff]
    %v1484 = vld [vmem:[%s4] sm:$0x1]
    %v1486 = vlaneseq
    %v1487 = vshrl.u32 %v1486, 7
    %v1488 = vsub.s32 0, %v1487
    %v1489 = vrot.slane %v1484, %v1488
    %v1491 = vadd.f32 %v1468, %v1489
    %v1492 = vadd.f32 %v1469, %v1489
    %v1493 = vadd.f32 %v1470, %v1489
    %v1494 = vadd.f32 %v1471, %v1489
    %v1495 = vadd.f32 %v1472, %v1489
    %v1496 = vadd.f32 %v1473, %v1489
    %v1497 = vadd.f32 %v1474, %v1489
    %v1498 = vadd.f32 %v1475, %v1489
    %v1499 = vadd.f32 %v1476, %v1489
    %v1500 = vadd.f32 %v1477, %v1489
    %v1501 = vadd.f32 %v1478, %v1489
    %v1502 = vadd.f32 %v1479, %v1489
    %v1503 = vadd.f32 %v1480, %v1489
    %v1504 = vadd.f32 %v1481, %v1489
    %v1505 = vadd.f32 %v1482, %v1489
    %v1506 = vadd.f32 %v1483, %v1489
    %1507 = vst.msk [vmem:[%s7] sm:$0xff] %vm397, %v1491
    %1508 = vst.msk [vmem:[%s7 + $0x8] sm:$0xff] %vm397, %v1492
    %1509 = vst.msk [vmem:[%s7 + $0x10] sm:$0xff] %vm397, %v1493
    %1510 = vst.msk [vmem:[%s7 + $0x18] sm:$0xff] %vm397, %v1494
    %1511 = vst.msk [vmem:[%s7 + $0x20] sm:$0xff] %vm397, %v1495
    %1512 = vst.msk [vmem:[%s7 + $0x28] sm:$0xff] %vm397, %v1496
    %1513 = vst.msk [vmem:[%s7 + $0x30] sm:$0xff] %vm397, %v1497
    %1514 = vst.msk [vmem:[%s7 + $0x38] sm:$0xff] %vm397, %v1498
    %1515 = vst.msk [vmem:[%s7 + $0x40] sm:$0xff] %vm397, %v1499
    %1516 = vst.msk [vmem:[%s7 + $0x48] sm:$0xff] %vm397, %v1500
    %1517 = vst.msk [vmem:[%s7 + $0x50] sm:$0xff] %vm397, %v1501
    %1518 = vst.msk [vmem:[%s7 + $0x58] sm:$0xff] %vm397, %v1502
    %1519 = vst.msk [vmem:[%s7 + $0x60] sm:$0xff] %vm397, %v1503
    %1520 = vst.msk [vmem:[%s7 + $0x68] sm:$0xff] %vm397, %v1504
    %1521 = vst.msk [vmem:[%s7 + $0x70] sm:$0xff] %vm397, %v1505
    %1522 = vst.msk [vmem:[%s7 + $0x78] sm:$0xff] %vm397, %v1506
  $region37: #{pre_ln_ffn.1} parent=0 // pred_fallthru
    _
  // Predicated region
  $region38: #{pre_ln_ffn.1} parent=0 // pred_check
    _
  $region39: #{pre_ln_ffn.1} parent=0 // pred_check_branch
    %1524 = sbr.rel (0) target = $region41
  $region40: #{pre_ln_ffn.1} parent=0 // pred_region
    _
  $region41: #{pre_ln_ffn.1} parent=0 // pred_fallthru
    _
  // Predicated region
  $region42: #{pre_ln_ffn.1} parent=0 // pred_check
    _
  $region43: #{pre_ln_ffn.1} parent=0 // pred_check_branch
    %1526 = sbr.rel (0) target = $region45
  $region44: #{pre_ln_ffn.1} parent=0 // pred_region
    _
  $region45: #{pre_ln_ffn.1} parent=0 // pred_fallthru
    _

</llo_original>
